<compile_context>
chip_gen: v7x
topology: tpu7x:2x2x1
jax: 0.10.0
libtpu: 0.0.40
codegen_flags: <defaults>
</compile_context>

<pallas_src>
import jax
import jax.numpy as jnp
from jax.experimental import pallas as pl
from jax.experimental.pallas import tpu as pltpu

STATE_DIM = 3
HIDDEN = 32
LANES = 128
EPS = 1e-8


def _wrap_angle(a):
    # wrap to [-pi, pi)
    return jnp.mod(a + jnp.pi, 2.0 * jnp.pi) - jnp.pi


def _make_motion_kernel(block_b, n_valid, n_pad):
    """Build a kernel processing `block_b` batch elements per grid step."""
    need_mask = n_valid != n_pad
    inv_n = 1.0 / float(n_valid)

    def kernel(actions_ref,    # SMEM (3*B,)  raw actions, flattened
               b3_ref,         # SMEM (3,)    last-layer bias
               act_bias_ref,   # (block_b, 32, 1)  W1[:3]^T @ action_in + b1
               rand_ref,       # (block_b, 3, n_pad)  standard-normal noise
               part_ref,       # (block_b, 3, n_pad)  particles (SoA)
               w1r_ref,        # (32, 3)  W1[3:6]^T  (random-input rows)
               w2_ref,         # (32, 32) W2^T
               b2_ref,         # (32, 1)
               w3_ref,         # (32, 3)  W3 (used column-wise)
               out_ref):       # (block_b, 3, n_pad)
        # Hoist weight loads / constants out of the (unrolled) batch loop.
        w1c0 = w1r_ref[:, 0:1]
        w1c1 = w1r_ref[:, 1:2]
        w1c2 = w1r_ref[:, 2:3]
        w2t = w2_ref[...]
        b2c = b2_ref[...]
        w3c0 = w3_ref[:, 0:1]
        w3c1 = w3_ref[:, 1:2]
        w3c2 = w3_ref[:, 2:3]
        b30 = b3_ref[0]
        b31 = b3_ref[1]
        b32 = b3_ref[2]

        if need_mask:
            lane = jax.lax.broadcasted_iota(jnp.int32, (1, n_pad), 1)
            mask = (lane < n_valid).astype(jnp.float32)

        def row_mean(row):  # masked mean over the valid particle lanes
            if need_mask:
                row = row * mask
            return jnp.sum(row, axis=1, keepdims=True) * inv_n

        base = pl.program_id(0) * block_b

        # Static (fully unrolled) loop: block_b is tiny, static indices keep
        # all ref loads/stores simple slices and give the scheduler full
        # visibility.
        for bi in range(block_b):
            b = base + bi
            rand = rand_ref[bi]            # (3, n_pad)
            p = part_ref[bi]               # (3, n_pad)

            # Layer 1 (6->32): the 3 random-input columns as VPU broadcast
            # MACs; the 3 action columns + b1 are pre-folded into act_bias.
            h = (w1c0 * rand[0:1, :]
                 + w1c1 * rand[1:2, :]
                 + w1c2 * rand[2:3, :]
                 + act_bias_ref[bi])                           # (32, n_pad)
            h = jnp.maximum(h, 0.0)

            # Layer 2 (32->32): the only MXU matmul.
            h = jnp.dot(w2t, h, preferred_element_type=jnp.float32) + b2c
            h = jnp.maximum(h, 0.0)

            # Layer 3 (32->3): three sublane (XLU) reductions, off the MXU.
            d0 = jnp.sum(w3c0 * h, axis=0, keepdims=True) + b30   # (1, n_pad)
            d1 = jnp.sum(w3c1 * h, axis=0, keepdims=True) + b31
            d2 = jnp.sum(w3c2 * h, axis=0, keepdims=True) + b32

            # Zero-mean the learned noise over the (valid) particle lanes.
            d0 = d0 - row_mean(d0)
            d1 = d1 - row_mean(d1)
            d2 = d2 - row_mean(d2)

            # noisy_actions = actions + delta (actions read as SMEM scalars).
            a0 = actions_ref[3 * b + 0]
            a1 = actions_ref[3 * b + 1]
            a2 = actions_ref[3 * b + 2]
            nx = d0 + a0
            ny = d1 + a1
            nth = d2 + a2

            theta = p[2:3, :]
            st = jnp.sin(theta)
            ct = jnp.cos(theta)

            # Three direct lane-dense sub-slab stores (no concatenate).
            out_ref[bi, 0:1, :] = p[0:1, :] + nx * ct - ny * st
            out_ref[bi, 1:2, :] = p[1:2, :] + nx * st + ny * ct
            out_ref[bi, 2:3, :] = _wrap_angle(theta + nth)

    return kernel


def motion_model_forward_soa(actions, particles_t, std_a, rand_t, params, *,
                             block_b=None):
    """SoA entry point: particles_t / rand_t are [B, 3, N]; returns [B, 3, N].

    Use this directly from a particle-filter loop to avoid all layout
    transposes around the kernel.
    """
    B, _, N = particles_t.shape
    w1, b1, w2, b2, w3, b3 = params

    # Lane-dense padding of the particle axis to a multiple of 128.
    n_pad = max(LANES, ((N + LANES - 1) // LANES) * LANES)
    if n_pad != N:
        pad = ((0, 0), (0, 0), (0, n_pad - N))
        particles_t = jnp.pad(particles_t, pad)
        rand_t = jnp.pad(rand_t, pad)

    # Batch fusion: amortize per-grid-step overhead for small slabs; keep >=2
    # steps (parallel axis) when there is enough work (matters on v7x's 2 TCs).
    if block_b is None:
        block_b = B if B * n_pad <= 8192 else max(1, B // 2)
    block_b = max(1, min(block_b, B))
    while B % block_b:
        block_b -= 1

    # Fold the per-batch action contribution of layer 1 into a (32, 1) bias;
    # std_a never enters the kernel.
    action_in = actions / (std_a + EPS)                               # (B, 3)
    act_bias = (action_in @ w1[:STATE_DIM, :] + b1).reshape(B, HIDDEN, 1)

    w1r_t = w1[STATE_DIM:, :].T                                       # (32, 3)
    w2_t = w2.T                                                       # (32, 32)
    b2_c = b2.reshape(HIDDEN, 1)                                      # (32, 1)
    w3_c = w3                                                         # (32, 3)
    b3_flat = b3.reshape(-1)                                          # (3,)
    actions_flat = actions.reshape(-1)                                # (3*B,)

    kernel = _make_motion_kernel(block_b, N, n_pad)

    in_specs = [
        pl.BlockSpec(memory_space=pltpu.MemorySpace.SMEM),            # actions
        pl.BlockSpec(memory_space=pltpu.MemorySpace.SMEM),            # b3
        pl.BlockSpec((block_b, HIDDEN, 1), lambda i: (i, 0, 0)),      # act_bias
        pl.BlockSpec((block_b, STATE_DIM, n_pad), lambda i: (i, 0, 0)),  # rand
        pl.BlockSpec((block_b, STATE_DIM, n_pad), lambda i: (i, 0, 0)),  # parts
        pl.BlockSpec((HIDDEN, STATE_DIM), lambda i: (0, 0)),          # W1r^T
        pl.BlockSpec((HIDDEN, HIDDEN), lambda i: (0, 0)),             # W2^T
        pl.BlockSpec((HIDDEN, 1), lambda i: (0, 0)),                  # b2
        pl.BlockSpec((HIDDEN, STATE_DIM), lambda i: (0, 0)),          # W3
    ]
    out_spec = pl.BlockSpec((block_b, STATE_DIM, n_pad), lambda i: (i, 0, 0))

    # Only raise the scoped-VMEM limit when the resident block set needs it
    # (never at the demo sizes).  Cap well below HBM-era limits; on v7x keep
    # block sizes small enough instead.
    est_vmem = (2 * (2 * block_b * STATE_DIM * n_pad + block_b * HIDDEN * 128)
                + 2 * block_b * STATE_DIM * n_pad
                + 8 * HIDDEN * n_pad) * 4
    vmem_limit = (min(int(est_vmem * 1.5), 100 * 1024 * 1024)
                  if est_vmem > 24 * 1024 * 1024 else None)

    out = pl.pallas_call(
        kernel,
        out_shape=jax.ShapeDtypeStruct((B, STATE_DIM, n_pad), jnp.float32),
        grid=(B // block_b,),
        in_specs=in_specs,
        out_specs=out_spec,
        compiler_params=pltpu.CompilerParams(
            dimension_semantics=("parallel",),
            vmem_limit_bytes=vmem_limit),
    )(actions_flat, b3_flat, act_bias, rand_t, particles_t,
      w1r_t, w2_t, b2_c, w3_c)

    if n_pad != N:
        out = out[:, :, :N]
    return out


def motion_model_forward(actions, particles, std_a, rand_noise, params, *,
                         block_b=None):
    """[B,N,3] interface matching the torch module (transposes in the wrapper).

    Prefer motion_model_forward_soa in a real particle-filter loop so the
    [B,3,N] layout stays end-to-end and these transposes disappear.
    """
    particles_t = jnp.transpose(particles, (0, 2, 1))                 # (B,3,N)
    rand_t = jnp.transpose(rand_noise, (0, 2, 1))                     # (B,3,N)
    out_t = motion_model_forward_soa(actions, particles_t, std_a, rand_t,
                                     params, block_b=block_b)
    return jnp.transpose(out_t, (0, 2, 1))                            # (B,N,3)


def motion_model_reference(actions, particles, std_a, rand_noise, params):
    """Plain-JAX reference of the same forward pass for validation."""
    w1, b1, w2, b2, w3, b3 = params
    B, N, _ = particles.shape
    action_in = (actions[:, None, :] / (std_a[None] + EPS))           # (B,1,3)
    action_in = jnp.broadcast_to(action_in, (B, N, STATE_DIM))
    inp = jnp.concatenate([action_in, rand_noise], axis=-1)           # (B,N,6)
    h = jax.nn.relu(inp @ w1 + b1)
    h = jax.nn.relu(h @ w2 + b2)
    delta = h @ w3 + b3
    delta = delta - jnp.mean(delta, axis=1, keepdims=True)
    noisy = actions[:, None, :] + delta
    theta = particles[:, :, 2:3]
    sin_t, cos_t = jnp.sin(theta), jnp.cos(theta)
    dx = noisy[:, :, 0:1] * cos_t - noisy[:, :, 1:2] * sin_t
    dy = noisy[:, :, 0:1] * sin_t + noisy[:, :, 1:2] * cos_t
    new_x = particles[:, :, 0:1] + dx
    new_y = particles[:, :, 1:2] + dy
    new_theta = _wrap_angle(particles[:, :, 2:3] + noisy[:, :, 2:3])
    return jnp.concatenate([new_x, new_y, new_theta], axis=-1)


def init_params(key):
    """Deterministic init of the noise_generator MLP (6->32->32->state_dim)."""
    ks = jax.random.split(key, 6)

    def linear(kw, kb, fan_in, fan_out):
        bound = 1.0 / jnp.sqrt(fan_in)
        w = jax.random.uniform(kw, (fan_in, fan_out), jnp.float32, -bound, bound)
        b = jax.random.uniform(kb, (1, fan_out), jnp.float32, -bound, bound)
        return w, b

    w1, b1 = linear(ks[0], ks[1], 6, HIDDEN)
    w2, b2 = linear(ks[2], ks[3], HIDDEN, HIDDEN)
    w3, b3 = linear(ks[4], ks[5], HIDDEN, STATE_DIM)
    return (w1, b1, w2, b2, w3, b3)


if __name__ == "__main__":
    key = jax.random.PRNGKey(0)
    k_param, k_act, k_part, k_std, k_noise = jax.random.split(key, 5)

    B, N = 2, 128  # batch, number of particles

    params = init_params(k_param)
    actions = jax.random.normal(k_act, (B, STATE_DIM), jnp.float32)
    particles = jax.random.normal(k_part, (B, N, STATE_DIM), jnp.float32)
    std_a = jnp.abs(jax.random.normal(k_std, (1, STATE_DIM), jnp.float32)) + 0.5
    # torch.randn_like(action_input) equivalent, sampled deterministically here
    rand_noise = jax.random.normal(k_noise, (B, N, STATE_DIM), jnp.float32)

    out = motion_model_forward(actions, particles, std_a, rand_noise, params)
    out = jax.block_until_ready(out)
    ref = motion_model_reference(actions, particles, std_a, rand_noise, params)
    ref = jax.block_until_ready(ref)
    assert out.shape == (B, N, STATE_DIM)
    assert jnp.allclose(out, ref, atol=1e-4, rtol=1e-4), "mismatch vs reference"

    # Non-128-aligned particle count exercises the lane-padding + masked-mean path.
    N2 = 100
    particles2 = jax.random.normal(k_part, (B, N2, STATE_DIM), jnp.float32)
    rand2 = jax.random.normal(k_noise, (B, N2, STATE_DIM), jnp.float32)
    out2 = jax.block_until_ready(
        motion_model_forward(actions, particles2, std_a, rand2, params))
    ref2 = motion_model_reference(actions, particles2, std_a, rand2, params)
    assert out2.shape == (B, N2, STATE_DIM)
    assert jnp.allclose(out2, ref2, atol=1e-4, rtol=1e-4), "mismatch (padded N)"

    print("KERNEL_OK")
</pallas_src>

<mosaic_0001>
module attributes {stable_mosaic.version = 11 : i64} {
  func.func @kernel(%arg0: i32, %arg1: memref<6xf32, #tpu.memory_space<smem>>, %arg2: memref<3xf32, #tpu.memory_space<smem>>, %arg3: memref<2x32x1xf32, #tpu.memory_space<vmem>>, %arg4: memref<2x3x128xf32, #tpu.memory_space<vmem>>, %arg5: memref<2x3x128xf32, #tpu.memory_space<vmem>>, %arg6: memref<32x3xf32, #tpu.memory_space<vmem>>, %arg7: memref<32x32xf32, #tpu.memory_space<vmem>>, %arg8: memref<32x1xf32, #tpu.memory_space<vmem>>, %arg9: memref<32x3xf32, #tpu.memory_space<vmem>>, %arg10: memref<2x3x128xf32, #tpu.memory_space<vmem>>) attributes {dimension_semantics = [#tpu.dimension_semantics<parallel>], iteration_bounds = array<i64: 1>, scalar_prefetch = 0 : i64, scratch_operands = 0 : i64, tpu.core_type = #tpu.core_type<tc>, window_params = [{transform_indices = @transform_0, window_bounds = array<i64: 6>}, {transform_indices = @transform_1, window_bounds = array<i64: 3>}, {transform_indices = @transform_2, window_bounds = array<i64: 2, 32, 1>}, {transform_indices = @transform_3, window_bounds = array<i64: 2, 3, 128>}, {transform_indices = @transform_4, window_bounds = array<i64: 2, 3, 128>}, {pipeline_mode = #tpu.pipeline_mode<synchronous>, transform_indices = @transform_5, window_bounds = array<i64: 32, 3>}, {pipeline_mode = #tpu.pipeline_mode<synchronous>, transform_indices = @transform_6, window_bounds = array<i64: 32, 32>}, {pipeline_mode = #tpu.pipeline_mode<synchronous>, transform_indices = @transform_7, window_bounds = array<i64: 32, 1>}, {pipeline_mode = #tpu.pipeline_mode<synchronous>, transform_indices = @transform_8, window_bounds = array<i64: 32, 3>}, {transform_indices = @transform_9, window_bounds = array<i64: 2, 3, 128>}]} {
    %c0 = arith.constant 0 : index
    %c0_0 = arith.constant 0 : index
    %0 = vector.load %arg6[%c0, %c0_0] : memref<32x3xf32, #tpu.memory_space<vmem>>, vector<32x1xf32>
    %c0_1 = arith.constant 0 : index
    %c1 = arith.constant 1 : index
    %1 = vector.load %arg6[%c0_1, %c1] : memref<32x3xf32, #tpu.memory_space<vmem>>, vector<32x1xf32>
    %c0_2 = arith.constant 0 : index
    %c2 = arith.constant 2 : index
    %2 = vector.load %arg6[%c0_2, %c2] : memref<32x3xf32, #tpu.memory_space<vmem>>, vector<32x1xf32>
    %c0_3 = arith.constant 0 : index
    %c0_4 = arith.constant 0 : index
    %3 = vector.load %arg7[%c0_3, %c0_4] : memref<32x32xf32, #tpu.memory_space<vmem>>, vector<32x32xf32>
    %c0_5 = arith.constant 0 : index
    %c0_6 = arith.constant 0 : index
    %4 = vector.load %arg8[%c0_5, %c0_6] : memref<32x1xf32, #tpu.memory_space<vmem>>, vector<32x1xf32>
    %c0_7 = arith.constant 0 : index
    %c0_8 = arith.constant 0 : index
    %5 = vector.load %arg9[%c0_7, %c0_8] : memref<32x3xf32, #tpu.memory_space<vmem>>, vector<32x1xf32>
    %c0_9 = arith.constant 0 : index
    %c1_10 = arith.constant 1 : index
    %6 = vector.load %arg9[%c0_9, %c1_10] : memref<32x3xf32, #tpu.memory_space<vmem>>, vector<32x1xf32>
    %c0_11 = arith.constant 0 : index
    %c2_12 = arith.constant 2 : index
    %7 = vector.load %arg9[%c0_11, %c2_12] : memref<32x3xf32, #tpu.memory_space<vmem>>, vector<32x1xf32>
    %c0_13 = arith.constant 0 : index
    %8 = memref.load %arg2[%c0_13] : memref<3xf32, #tpu.memory_space<smem>>
    %c1_14 = arith.constant 1 : index
    %9 = memref.load %arg2[%c1_14] : memref<3xf32, #tpu.memory_space<smem>>
    %c2_15 = arith.constant 2 : index
    %10 = memref.load %arg2[%c2_15] : memref<3xf32, #tpu.memory_space<smem>>
    %c2_i32 = arith.constant 2 : i32
    %11 = arith.muli %arg0, %c2_i32 : i32
    %c0_i32 = arith.constant 0 : i32
    %12 = arith.addi %11, %c0_i32 : i32
    %c0_16 = arith.constant 0 : index
    %c0_17 = arith.constant 0 : index
    %c0_18 = arith.constant 0 : index
    %13 = vector.load %arg4[%c0_16, %c0_17, %c0_18] : memref<2x3x128xf32, #tpu.memory_space<vmem>>, vector<1x3x128xf32>
    %14 = vector.shape_cast %13 : vector<1x3x128xf32> to vector<3x128xf32>
    %c0_19 = arith.constant 0 : index
    %c0_20 = arith.constant 0 : index
    %c0_21 = arith.constant 0 : index
    %15 = vector.load %arg5[%c0_19, %c0_20, %c0_21] : memref<2x3x128xf32, #tpu.memory_space<vmem>>, vector<1x3x128xf32>
    %16 = vector.shape_cast %15 : vector<1x3x128xf32> to vector<3x128xf32>
    %17 = vector.extract_strided_slice %14 {offsets = [0, 0], sizes = [1, 128], strides = [1, 1]} : vector<3x128xf32> to vector<1x128xf32>
    %18 = vector.broadcast %0 : vector<32x1xf32> to vector<32x128xf32>
    %19 = vector.broadcast %17 : vector<1x128xf32> to vector<32x128xf32>
    %20 = arith.mulf %18, %19 : vector<32x128xf32>
    %21 = vector.extract_strided_slice %14 {offsets = [1, 0], sizes = [1, 128], strides = [1, 1]} : vector<3x128xf32> to vector<1x128xf32>
    %22 = vector.broadcast %1 : vector<32x1xf32> to vector<32x128xf32>
    %23 = vector.broadcast %21 : vector<1x128xf32> to vector<32x128xf32>
    %24 = arith.mulf %22, %23 : vector<32x128xf32>
    %25 = arith.addf %20, %24 : vector<32x128xf32>
    %26 = vector.extract_strided_slice %14 {offsets = [2, 0], sizes = [1, 128], strides = [1, 1]} : vector<3x128xf32> to vector<1x128xf32>
    %27 = vector.broadcast %2 : vector<32x1xf32> to vector<32x128xf32>
    %28 = vector.broadcast %26 : vector<1x128xf32> to vector<32x128xf32>
    %29 = arith.mulf %27, %28 : vector<32x128xf32>
    %30 = arith.addf %25, %29 : vector<32x128xf32>
    %c0_22 = arith.constant 0 : index
    %c0_23 = arith.constant 0 : index
    %c0_24 = arith.constant 0 : index
    %31 = vector.load %arg3[%c0_22, %c0_23, %c0_24] : memref<2x32x1xf32, #tpu.memory_space<vmem>>, vector<1x32x1xf32>
    %32 = vector.shape_cast %31 : vector<1x32x1xf32> to vector<32x1xf32>
    %33 = vector.broadcast %32 : vector<32x1xf32> to vector<32x128xf32>
    %34 = arith.addf %30, %33 : vector<32x128xf32>
    %cst = arith.constant 0.000000e+00 : f32
    %35 = vector.broadcast %cst : f32 to vector<32x128xf32>
    %36 = arith.maximumf %34, %35 : vector<32x128xf32>
    %cst_25 = arith.constant dense<0.000000e+00> : vector<32x128xf32>
    %37 = tpu.matmul %3, %36, %cst_25 {dimension_numbers = #tpu.dot_dimension_numbers<[1], [0], [0], [1], [0, 0, 1, 1], [], []>} : vector<32x32xf32>, vector<32x128xf32>, vector<32x128xf32> -> vector<32x128xf32>
    %38 = vector.broadcast %4 : vector<32x1xf32> to vector<32x128xf32>
    %39 = arith.addf %37, %38 : vector<32x128xf32>
    %cst_26 = arith.constant 0.000000e+00 : f32
    %40 = vector.broadcast %cst_26 : f32 to vector<32x128xf32>
    %41 = arith.maximumf %39, %40 : vector<32x128xf32>
    %42 = vector.broadcast %5 : vector<32x1xf32> to vector<32x128xf32>
    %43 = arith.mulf %42, %41 : vector<32x128xf32>
    %cst_27 = arith.constant dense<0.000000e+00> : vector<128xf32>
    %44 = vector.multi_reduction <add>, %43, %cst_27 [0] : vector<32x128xf32> to vector<128xf32>
    %45 = vector.shape_cast %44 : vector<128xf32> to vector<1x128xf32>
    %46 = vector.broadcast %8 : f32 to vector<1x128xf32>
    %47 = arith.addf %45, %46 : vector<1x128xf32>
    %48 = vector.broadcast %6 : vector<32x1xf32> to vector<32x128xf32>
    %49 = arith.mulf %48, %41 : vector<32x128xf32>
    %cst_28 = arith.constant dense<0.000000e+00> : vector<128xf32>
    %50 = vector.multi_reduction <add>, %49, %cst_28 [0] : vector<32x128xf32> to vector<128xf32>
    %51 = vector.shape_cast %50 : vector<128xf32> to vector<1x128xf32>
    %52 = vector.broadcast %9 : f32 to vector<1x128xf32>
    %53 = arith.addf %51, %52 : vector<1x128xf32>
    %54 = vector.broadcast %7 : vector<32x1xf32> to vector<32x128xf32>
    %55 = arith.mulf %54, %41 : vector<32x128xf32>
    %cst_29 = arith.constant dense<0.000000e+00> : vector<128xf32>
    %56 = vector.multi_reduction <add>, %55, %cst_29 [0] : vector<32x128xf32> to vector<128xf32>
    %57 = vector.shape_cast %56 : vector<128xf32> to vector<1x128xf32>
    %58 = vector.broadcast %10 : f32 to vector<1x128xf32>
    %59 = arith.addf %57, %58 : vector<1x128xf32>
    %cst_30 = arith.constant dense<0.000000e+00> : vector<1xf32>
    %60 = vector.multi_reduction <add>, %47, %cst_30 [1] : vector<1x128xf32> to vector<1xf32>
    %61 = vector.shape_cast %60 : vector<1xf32> to vector<1x1xf32>
    %cst_31 = arith.constant 7.812500e-03 : f32
    %62 = vector.broadcast %cst_31 : f32 to vector<1x1xf32>
    %63 = arith.mulf %61, %62 : vector<1x1xf32>
    %64 = vector.broadcast %63 : vector<1x1xf32> to vector<1x128xf32>
    %65 = arith.subf %47, %64 : vector<1x128xf32>
    %cst_32 = arith.constant dense<0.000000e+00> : vector<1xf32>
    %66 = vector.multi_reduction <add>, %53, %cst_32 [1] : vector<1x128xf32> to vector<1xf32>
    %67 = vector.shape_cast %66 : vector<1xf32> to vector<1x1xf32>
    %cst_33 = arith.constant 7.812500e-03 : f32
    %68 = vector.broadcast %cst_33 : f32 to vector<1x1xf32>
    %69 = arith.mulf %67, %68 : vector<1x1xf32>
    %70 = vector.broadcast %69 : vector<1x1xf32> to vector<1x128xf32>
    %71 = arith.subf %53, %70 : vector<1x128xf32>
    %cst_34 = arith.constant dense<0.000000e+00> : vector<1xf32>
    %72 = vector.multi_reduction <add>, %59, %cst_34 [1] : vector<1x128xf32> to vector<1xf32>
    %73 = vector.shape_cast %72 : vector<1xf32> to vector<1x1xf32>
    %cst_35 = arith.constant 7.812500e-03 : f32
    %74 = vector.broadcast %cst_35 : f32 to vector<1x1xf32>
    %75 = arith.mulf %73, %74 : vector<1x1xf32>
    %76 = vector.broadcast %75 : vector<1x1xf32> to vector<1x128xf32>
    %77 = arith.subf %59, %76 : vector<1x128xf32>
    %c3_i32 = arith.constant 3 : i32
    %78 = arith.muli %c3_i32, %12 : i32
    %c0_i32_36 = arith.constant 0 : i32
    %79 = arith.addi %78, %c0_i32_36 : i32
    %80 = arith.index_cast %79 : i32 to index
    %81 = memref.load %arg1[%80] : memref<6xf32, #tpu.memory_space<smem>>
    %c3_i32_37 = arith.constant 3 : i32
    %82 = arith.muli %c3_i32_37, %12 : i32
    %c1_i32 = arith.constant 1 : i32
    %83 = arith.addi %82, %c1_i32 : i32
    %84 = arith.index_cast %83 : i32 to index
    %85 = memref.load %arg1[%84] : memref<6xf32, #tpu.memory_space<smem>>
    %c3_i32_38 = arith.constant 3 : i32
    %86 = arith.muli %c3_i32_38, %12 : i32
    %c2_i32_39 = arith.constant 2 : i32
    %87 = arith.addi %86, %c2_i32_39 : i32
    %88 = arith.index_cast %87 : i32 to index
    %89 = memref.load %arg1[%88] : memref<6xf32, #tpu.memory_space<smem>>
    %90 = vector.broadcast %81 : f32 to vector<1x128xf32>
    %91 = arith.addf %65, %90 : vector<1x128xf32>
    %92 = vector.broadcast %85 : f32 to vector<1x128xf32>
    %93 = arith.addf %71, %92 : vector<1x128xf32>
    %94 = vector.broadcast %89 : f32 to vector<1x128xf32>
    %95 = arith.addf %77, %94 : vector<1x128xf32>
    %96 = vector.extract_strided_slice %16 {offsets = [2, 0], sizes = [1, 128], strides = [1, 1]} : vector<3x128xf32> to vector<1x128xf32>
    %97 = math.sin %96 : vector<1x128xf32>
    %98 = math.cos %96 : vector<1x128xf32>
    %99 = vector.extract_strided_slice %16 {offsets = [0, 0], sizes = [1, 128], strides = [1, 1]} : vector<3x128xf32> to vector<1x128xf32>
    %100 = arith.mulf %91, %98 : vector<1x128xf32>
    %101 = arith.addf %99, %100 : vector<1x128xf32>
    %102 = arith.mulf %93, %97 : vector<1x128xf32>
    %103 = arith.subf %101, %102 : vector<1x128xf32>
    %c0_40 = arith.constant 0 : index
    %c0_41 = arith.constant 0 : index
    %c0_42 = arith.constant 0 : index
    %104 = vector.load %arg10[%c0_40, %c0_41, %c0_42] : memref<2x3x128xf32, #tpu.memory_space<vmem>>, vector<1x1x128xf32>
    %105 = vector.shape_cast %104 : vector<1x1x128xf32> to vector<1x128xf32>
    %106 = vector.shape_cast %103 : vector<1x128xf32> to vector<1x1x128xf32>
    tpu.vector_store %arg10[%c0_40, %c0_41, %c0_42], %106 {strides = array<i32>} : memref<2x3x128xf32, #tpu.memory_space<vmem>>, vector<1x1x128xf32>,
    %107 = vector.extract_strided_slice %16 {offsets = [1, 0], sizes = [1, 128], strides = [1, 1]} : vector<3x128xf32> to vector<1x128xf32>
    %108 = arith.mulf %91, %97 : vector<1x128xf32>
    %109 = arith.addf %107, %108 : vector<1x128xf32>
    %110 = arith.mulf %93, %98 : vector<1x128xf32>
    %111 = arith.addf %109, %110 : vector<1x128xf32>
    %c0_43 = arith.constant 0 : index
    %c1_44 = arith.constant 1 : index
    %c0_45 = arith.constant 0 : index
    %112 = vector.load %arg10[%c0_43, %c1_44, %c0_45] : memref<2x3x128xf32, #tpu.memory_space<vmem>>, vector<1x1x128xf32>
    %113 = vector.shape_cast %112 : vector<1x1x128xf32> to vector<1x128xf32>
    %114 = vector.shape_cast %111 : vector<1x128xf32> to vector<1x1x128xf32>
    tpu.vector_store %arg10[%c0_43, %c1_44, %c0_45], %114 {strides = array<i32>} : memref<2x3x128xf32, #tpu.memory_space<vmem>>, vector<1x1x128xf32>,
    %115 = arith.addf %96, %95 : vector<1x128xf32>
    %cst_46 = arith.constant 3.14159274 : f32
    %116 = vector.broadcast %cst_46 : f32 to vector<1x128xf32>
    %117 = arith.addf %115, %116 : vector<1x128xf32>
    %cst_47 = arith.constant 6.28318548 : f32
    %118 = vector.broadcast %cst_47 : f32 to vector<1x128xf32>
    %119 = arith.remf %117, %118 : vector<1x128xf32>
    %cst_48 = arith.constant 0.000000e+00 : f32
    %120 = vector.broadcast %cst_48 : f32 to vector<1x128xf32>
    %121 = arith.cmpf one, %119, %120 : vector<1x128xf32>
    %cst_49 = arith.constant 0.000000e+00 : f32
    %122 = vector.broadcast %cst_49 : f32 to vector<1x128xf32>
    %123 = arith.cmpf olt, %119, %122 : vector<1x128xf32>
    %cst_50 = arith.constant 0.000000e+00 : f32
    %124 = arith.cmpf olt, %cst_47, %cst_50 : f32
    %125 = vector.broadcast %124 : i1 to vector<1x128xi1>
    %126 = vector.broadcast %125 : vector<1x128xi1> to vector<1x128xi1>
    %127 = arith.xori %123, %126 : vector<1x128xi1>
    %128 = arith.andi %127, %121 : vector<1x128xi1>
    %129 = vector.broadcast %cst_47 : f32 to vector<1x128xf32>
    %130 = arith.addf %119, %129 : vector<1x128xf32>
    %131 = arith.select %128, %130, %119 : vector<1x128xi1>, vector<1x128xf32>
    %cst_51 = arith.constant 3.14159274 : f32
    %132 = vector.broadcast %cst_51 : f32 to vector<1x128xf32>
    %133 = arith.subf %131, %132 : vector<1x128xf32>
    %c0_52 = arith.constant 0 : index
    %c2_53 = arith.constant 2 : index
    %c0_54 = arith.constant 0 : index
    %134 = vector.load %arg10[%c0_52, %c2_53, %c0_54] : memref<2x3x128xf32, #tpu.memory_space<vmem>>, vector<1x1x128xf32>
    %135 = vector.shape_cast %134 : vector<1x1x128xf32> to vector<1x128xf32>
    %136 = vector.shape_cast %133 : vector<1x128xf32> to vector<1x1x128xf32>
    tpu.vector_store %arg10[%c0_52, %c2_53, %c0_54], %136 {strides = array<i32>} : memref<2x3x128xf32, #tpu.memory_space<vmem>>, vector<1x1x128xf32>,
    %c1_i32_55 = arith.constant 1 : i32
    %137 = arith.addi %11, %c1_i32_55 : i32
    %c1_56 = arith.constant 1 : index
    %c0_57 = arith.constant 0 : index
    %c0_58 = arith.constant 0 : index
    %138 = vector.load %arg4[%c1_56, %c0_57, %c0_58] : memref<2x3x128xf32, #tpu.memory_space<vmem>>, vector<1x3x128xf32>
    %139 = vector.shape_cast %138 : vector<1x3x128xf32> to vector<3x128xf32>
    %c1_59 = arith.constant 1 : index
    %c0_60 = arith.constant 0 : index
    %c0_61 = arith.constant 0 : index
    %140 = vector.load %arg5[%c1_59, %c0_60, %c0_61] : memref<2x3x128xf32, #tpu.memory_space<vmem>>, vector<1x3x128xf32>
    %141 = vector.shape_cast %140 : vector<1x3x128xf32> to vector<3x128xf32>
    %142 = vector.extract_strided_slice %139 {offsets = [0, 0], sizes = [1, 128], strides = [1, 1]} : vector<3x128xf32> to vector<1x128xf32>
    %143 = vector.broadcast %0 : vector<32x1xf32> to vector<32x128xf32>
    %144 = vector.broadcast %142 : vector<1x128xf32> to vector<32x128xf32>
    %145 = arith.mulf %143, %144 : vector<32x128xf32>
    %146 = vector.extract_strided_slice %139 {offsets = [1, 0], sizes = [1, 128], strides = [1, 1]} : vector<3x128xf32> to vector<1x128xf32>
    %147 = vector.broadcast %1 : vector<32x1xf32> to vector<32x128xf32>
    %148 = vector.broadcast %146 : vector<1x128xf32> to vector<32x128xf32>
    %149 = arith.mulf %147, %148 : vector<32x128xf32>
    %150 = arith.addf %145, %149 : vector<32x128xf32>
    %151 = vector.extract_strided_slice %139 {offsets = [2, 0], sizes = [1, 128], strides = [1, 1]} : vector<3x128xf32> to vector<1x128xf32>
    %152 = vector.broadcast %2 : vector<32x1xf32> to vector<32x128xf32>
    %153 = vector.broadcast %151 : vector<1x128xf32> to vector<32x128xf32>
    %154 = arith.mulf %152, %153 : vector<32x128xf32>
    %155 = arith.addf %150, %154 : vector<32x128xf32>
    %c1_62 = arith.constant 1 : index
    %c0_63 = arith.constant 0 : index
    %c0_64 = arith.constant 0 : index
    %156 = vector.load %arg3[%c1_62, %c0_63, %c0_64] : memref<2x32x1xf32, #tpu.memory_space<vmem>>, vector<1x32x1xf32>
    %157 = vector.shape_cast %156 : vector<1x32x1xf32> to vector<32x1xf32>
    %158 = vector.broadcast %157 : vector<32x1xf32> to vector<32x128xf32>
    %159 = arith.addf %155, %158 : vector<32x128xf32>
    %cst_65 = arith.constant 0.000000e+00 : f32
    %160 = vector.broadcast %cst_65 : f32 to vector<32x128xf32>
    %161 = arith.maximumf %159, %160 : vector<32x128xf32>
    %cst_66 = arith.constant dense<0.000000e+00> : vector<32x128xf32>
    %162 = tpu.matmul %3, %161, %cst_66 {dimension_numbers = #tpu.dot_dimension_numbers<[1], [0], [0], [1], [0, 0, 1, 1], [], []>} : vector<32x32xf32>, vector<32x128xf32>, vector<32x128xf32> -> vector<32x128xf32>
    %163 = vector.broadcast %4 : vector<32x1xf32> to vector<32x128xf32>
    %164 = arith.addf %162, %163 : vector<32x128xf32>
    %cst_67 = arith.constant 0.000000e+00 : f32
    %165 = vector.broadcast %cst_67 : f32 to vector<32x128xf32>
    %166 = arith.maximumf %164, %165 : vector<32x128xf32>
    %167 = vector.broadcast %5 : vector<32x1xf32> to vector<32x128xf32>
    %168 = arith.mulf %167, %166 : vector<32x128xf32>
    %cst_68 = arith.constant dense<0.000000e+00> : vector<128xf32>
    %169 = vector.multi_reduction <add>, %168, %cst_68 [0] : vector<32x128xf32> to vector<128xf32>
    %170 = vector.shape_cast %169 : vector<128xf32> to vector<1x128xf32>
    %171 = vector.broadcast %8 : f32 to vector<1x128xf32>
    %172 = arith.addf %170, %171 : vector<1x128xf32>
    %173 = vector.broadcast %6 : vector<32x1xf32> to vector<32x128xf32>
    %174 = arith.mulf %173, %166 : vector<32x128xf32>
    %cst_69 = arith.constant dense<0.000000e+00> : vector<128xf32>
    %175 = vector.multi_reduction <add>, %174, %cst_69 [0] : vector<32x128xf32> to vector<128xf32>
    %176 = vector.shape_cast %175 : vector<128xf32> to vector<1x128xf32>
    %177 = vector.broadcast %9 : f32 to vector<1x128xf32>
    %178 = arith.addf %176, %177 : vector<1x128xf32>
    %179 = vector.broadcast %7 : vector<32x1xf32> to vector<32x128xf32>
    %180 = arith.mulf %179, %166 : vector<32x128xf32>
    %cst_70 = arith.constant dense<0.000000e+00> : vector<128xf32>
    %181 = vector.multi_reduction <add>, %180, %cst_70 [0] : vector<32x128xf32> to vector<128xf32>
    %182 = vector.shape_cast %181 : vector<128xf32> to vector<1x128xf32>
    %183 = vector.broadcast %10 : f32 to vector<1x128xf32>
    %184 = arith.addf %182, %183 : vector<1x128xf32>
    %cst_71 = arith.constant dense<0.000000e+00> : vector<1xf32>
    %185 = vector.multi_reduction <add>, %172, %cst_71 [1] : vector<1x128xf32> to vector<1xf32>
    %186 = vector.shape_cast %185 : vector<1xf32> to vector<1x1xf32>
    %cst_72 = arith.constant 7.812500e-03 : f32
    %187 = vector.broadcast %cst_72 : f32 to vector<1x1xf32>
    %188 = arith.mulf %186, %187 : vector<1x1xf32>
    %189 = vector.broadcast %188 : vector<1x1xf32> to vector<1x128xf32>
    %190 = arith.subf %172, %189 : vector<1x128xf32>
    %cst_73 = arith.constant dense<0.000000e+00> : vector<1xf32>
    %191 = vector.multi_reduction <add>, %178, %cst_73 [1] : vector<1x128xf32> to vector<1xf32>
    %192 = vector.shape_cast %191 : vector<1xf32> to vector<1x1xf32>
    %cst_74 = arith.constant 7.812500e-03 : f32
    %193 = vector.broadcast %cst_74 : f32 to vector<1x1xf32>
    %194 = arith.mulf %192, %193 : vector<1x1xf32>
    %195 = vector.broadcast %194 : vector<1x1xf32> to vector<1x128xf32>
    %196 = arith.subf %178, %195 : vector<1x128xf32>
    %cst_75 = arith.constant dense<0.000000e+00> : vector<1xf32>
    %197 = vector.multi_reduction <add>, %184, %cst_75 [1] : vector<1x128xf32> to vector<1xf32>
    %198 = vector.shape_cast %197 : vector<1xf32> to vector<1x1xf32>
    %cst_76 = arith.constant 7.812500e-03 : f32
    %199 = vector.broadcast %cst_76 : f32 to vector<1x1xf32>
    %200 = arith.mulf %198, %199 : vector<1x1xf32>
    %201 = vector.broadcast %200 : vector<1x1xf32> to vector<1x128xf32>
    %202 = arith.subf %184, %201 : vector<1x128xf32>
    %c3_i32_77 = arith.constant 3 : i32
    %203 = arith.muli %c3_i32_77, %137 : i32
    %c0_i32_78 = arith.constant 0 : i32
    %204 = arith.addi %203, %c0_i32_78 : i32
    %205 = arith.index_cast %204 : i32 to index
    %206 = memref.load %arg1[%205] : memref<6xf32, #tpu.memory_space<smem>>
    %c3_i32_79 = arith.constant 3 : i32
    %207 = arith.muli %c3_i32_79, %137 : i32
    %c1_i32_80 = arith.constant 1 : i32
    %208 = arith.addi %207, %c1_i32_80 : i32
    %209 = arith.index_cast %208 : i32 to index
    %210 = memref.load %arg1[%209] : memref<6xf32, #tpu.memory_space<smem>>
    %c3_i32_81 = arith.constant 3 : i32
    %211 = arith.muli %c3_i32_81, %137 : i32
    %c2_i32_82 = arith.constant 2 : i32
    %212 = arith.addi %211, %c2_i32_82 : i32
    %213 = arith.index_cast %212 : i32 to index
    %214 = memref.load %arg1[%213] : memref<6xf32, #tpu.memory_space<smem>>
    %215 = vector.broadcast %206 : f32 to vector<1x128xf32>
    %216 = arith.addf %190, %215 : vector<1x128xf32>
    %217 = vector.broadcast %210 : f32 to vector<1x128xf32>
    %218 = arith.addf %196, %217 : vector<1x128xf32>
    %219 = vector.broadcast %214 : f32 to vector<1x128xf32>
    %220 = arith.addf %202, %219 : vector<1x128xf32>
    %221 = vector.extract_strided_slice %141 {offsets = [2, 0], sizes = [1, 128], strides = [1, 1]} : vector<3x128xf32> to vector<1x128xf32>
    %222 = math.sin %221 : vector<1x128xf32>
    %223 = math.cos %221 : vector<1x128xf32>
    %224 = vector.extract_strided_slice %141 {offsets = [0, 0], sizes = [1, 128], strides = [1, 1]} : vector<3x128xf32> to vector<1x128xf32>
    %225 = arith.mulf %216, %223 : vector<1x128xf32>
    %226 = arith.addf %224, %225 : vector<1x128xf32>
    %227 = arith.mulf %218, %222 : vector<1x128xf32>
    %228 = arith.subf %226, %227 : vector<1x128xf32>
    %c1_83 = arith.constant 1 : index
    %c0_84 = arith.constant 0 : index
    %c0_85 = arith.constant 0 : index
    %229 = vector.load %arg10[%c1_83, %c0_84, %c0_85] : memref<2x3x128xf32, #tpu.memory_space<vmem>>, vector<1x1x128xf32>
    %230 = vector.shape_cast %229 : vector<1x1x128xf32> to vector<1x128xf32>
    %231 = vector.shape_cast %228 : vector<1x128xf32> to vector<1x1x128xf32>
    tpu.vector_store %arg10[%c1_83, %c0_84, %c0_85], %231 {strides = array<i32>} : memref<2x3x128xf32, #tpu.memory_space<vmem>>, vector<1x1x128xf32>,
    %232 = vector.extract_strided_slice %141 {offsets = [1, 0], sizes = [1, 128], strides = [1, 1]} : vector<3x128xf32> to vector<1x128xf32>
    %233 = arith.mulf %216, %222 : vector<1x128xf32>
    %234 = arith.addf %232, %233 : vector<1x128xf32>
    %235 = arith.mulf %218, %223 : vector<1x128xf32>
    %236 = arith.addf %234, %235 : vector<1x128xf32>
    %c1_86 = arith.constant 1 : index
    %c1_87 = arith.constant 1 : index
    %c0_88 = arith.constant 0 : index
    %237 = vector.load %arg10[%c1_86, %c1_87, %c0_88] : memref<2x3x128xf32, #tpu.memory_space<vmem>>, vector<1x1x128xf32>
    %238 = vector.shape_cast %237 : vector<1x1x128xf32> to vector<1x128xf32>
    %239 = vector.shape_cast %236 : vector<1x128xf32> to vector<1x1x128xf32>
    tpu.vector_store %arg10[%c1_86, %c1_87, %c0_88], %239 {strides = array<i32>} : memref<2x3x128xf32, #tpu.memory_space<vmem>>, vector<1x1x128xf32>,
    %240 = arith.addf %221, %220 : vector<1x128xf32>
    %cst_89 = arith.constant 3.14159274 : f32
    %241 = vector.broadcast %cst_89 : f32 to vector<1x128xf32>
    %242 = arith.addf %240, %241 : vector<1x128xf32>
    %cst_90 = arith.constant 6.28318548 : f32
    %243 = vector.broadcast %cst_90 : f32 to vector<1x128xf32>
    %244 = arith.remf %242, %243 : vector<1x128xf32>
    %cst_91 = arith.constant 0.000000e+00 : f32
    %245 = vector.broadcast %cst_91 : f32 to vector<1x128xf32>
    %246 = arith.cmpf one, %244, %245 : vector<1x128xf32>
    %cst_92 = arith.constant 0.000000e+00 : f32
    %247 = vector.broadcast %cst_92 : f32 to vector<1x128xf32>
    %248 = arith.cmpf olt, %244, %247 : vector<1x128xf32>
    %cst_93 = arith.constant 0.000000e+00 : f32
    %249 = arith.cmpf olt, %cst_90, %cst_93 : f32
    %250 = vector.broadcast %249 : i1 to vector<1x128xi1>
    %251 = vector.broadcast %250 : vector<1x128xi1> to vector<1x128xi1>
    %252 = arith.xori %248, %251 : vector<1x128xi1>
    %253 = arith.andi %252, %246 : vector<1x128xi1>
    %254 = vector.broadcast %cst_90 : f32 to vector<1x128xf32>
    %255 = arith.addf %244, %254 : vector<1x128xf32>
    %256 = arith.select %253, %255, %244 : vector<1x128xi1>, vector<1x128xf32>
    %cst_94 = arith.constant 3.14159274 : f32
    %257 = vector.broadcast %cst_94 : f32 to vector<1x128xf32>
    %258 = arith.subf %256, %257 : vector<1x128xf32>
    %c1_95 = arith.constant 1 : index
    %c2_96 = arith.constant 2 : index
    %c0_97 = arith.constant 0 : index
    %259 = vector.load %arg10[%c1_95, %c2_96, %c0_97] : memref<2x3x128xf32, #tpu.memory_space<vmem>>, vector<1x1x128xf32>
    %260 = vector.shape_cast %259 : vector<1x1x128xf32> to vector<1x128xf32>
    %261 = vector.shape_cast %258 : vector<1x128xf32> to vector<1x1x128xf32>
    tpu.vector_store %arg10[%c1_95, %c2_96, %c0_97], %261 {strides = array<i32>} : memref<2x3x128xf32, #tpu.memory_space<vmem>>, vector<1x1x128xf32>,
    return
  }
  func.func @transform_0(%arg0: i32) -> i32 {
    %c0_i32 = arith.constant 0 : i32
    %c0_i32_0 = arith.constant 0 : i32
    return %c0_i32 : i32
  }
  func.func @transform_1(%arg0: i32) -> i32 {
    %c0_i32 = arith.constant 0 : i32
    %c0_i32_0 = arith.constant 0 : i32
    return %c0_i32 : i32
  }
  func.func @transform_2(%arg0: i32) -> (i32, i32, i32) {
    %c0_i32 = arith.constant 0 : i32
    %c0_i32_0 = arith.constant 0 : i32
    %c0_i32_1 = arith.constant 0 : i32
    return %arg0, %c0_i32, %c0_i32_0 : i32, i32, i32
  }
  func.func @transform_3(%arg0: i32) -> (i32, i32, i32) {
    %c0_i32 = arith.constant 0 : i32
    %c0_i32_0 = arith.constant 0 : i32
    %c0_i32_1 = arith.constant 0 : i32
    return %arg0, %c0_i32, %c0_i32_0 : i32, i32, i32
  }
  func.func @transform_4(%arg0: i32) -> (i32, i32, i32) {
    %c0_i32 = arith.constant 0 : i32
    %c0_i32_0 = arith.constant 0 : i32
    %c0_i32_1 = arith.constant 0 : i32
    return %arg0, %c0_i32, %c0_i32_0 : i32, i32, i32
  }
  func.func @transform_5(%arg0: i32) -> (i32, i32) {
    %c0_i32 = arith.constant 0 : i32
    %c0_i32_0 = arith.constant 0 : i32
    %c0_i32_1 = arith.constant 0 : i32
    return %c0_i32, %c0_i32_0 : i32, i32
  }
  func.func @transform_6(%arg0: i32) -> (i32, i32) {
    %c0_i32 = arith.constant 0 : i32
    %c0_i32_0 = arith.constant 0 : i32
    %c0_i32_1 = arith.constant 0 : i32
    return %c0_i32, %c0_i32_0 : i32, i32
  }
  func.func @transform_7(%arg0: i32) -> (i32, i32) {
    %c0_i32 = arith.constant 0 : i32
    %c0_i32_0 = arith.constant 0 : i32
    %c0_i32_1 = arith.constant 0 : i32
    return %c0_i32, %c0_i32_0 : i32, i32
  }
  func.func @transform_8(%arg0: i32) -> (i32, i32) {
    %c0_i32 = arith.constant 0 : i32
    %c0_i32_0 = arith.constant 0 : i32
    %c0_i32_1 = arith.constant 0 : i32
    return %c0_i32, %c0_i32_0 : i32, i32
  }
  func.func @transform_9(%arg0: i32) -> (i32, i32, i32) {
    %c0_i32 = arith.constant 0 : i32
    %c0_i32_0 = arith.constant 0 : i32
    %c0_i32_1 = arith.constant 0 : i32
    return %arg0, %c0_i32, %c0_i32_0 : i32, i32, i32
  }
}

</mosaic_0001>

<llo_original>
// kernel: tpu_custom_call.1
$region0: #{tpu_custom_call.1}
  #allocation0 [shape = 'u32[]', space=smem, size = 0x4, offset = 0x4, fixed_abs, tag = 'smem constant byte address 0x4 - core index']
  #allocation1 [shape = 'u32[144,128]{1,0:T(1,128)}', space=vmem, size = 0x12000, scoped, tag = 'internal scratch']
  %s0 = inlined_call_operand.vmem [shape: f32[6], index: 0, kind: input, shape index: {}]
  %s1 = inlined_call_operand.vmem [shape: f32[3], index: 1, kind: input, shape index: {}]
  %s2 = inlined_call_operand.vmem [shape: f32[2,32,1], index: 2, kind: input, shape index: {}]
  %s3 = inlined_call_operand.vmem [shape: f32[2,3,128], index: 3, kind: input, shape index: {}]
  %s4 = inlined_call_operand.vmem [shape: f32[2,3,128], index: 4, kind: input, shape index: {}]
  %s5 = inlined_call_operand.vmem [shape: f32[32,3], index: 5, kind: input, shape index: {}]
  %s6 = inlined_call_operand.vmem [shape: f32[32,32], index: 6, kind: input, shape index: {}]
  %s7 = inlined_call_operand.vmem [shape: f32[32,1], index: 7, kind: input, shape index: {}]
  %s8 = inlined_call_operand.vmem [shape: f32[32,3], index: 8, kind: input, shape index: {}]
  %s9 = inlined_call_operand.vmem [shape: f32[2,3,128], index: 9, kind: output, shape index: {}]
  %s10 = sld [smem:[#allocation0]]
  $region54: #{tpu_custom_call.1} parent=0
    _
  %s12 = ssub.s32 1, %s10
  %s13 = scalar_select 0, %s12, %s10
  $region1: #{tpu_custom_call.1} parent=0
    #allocation2 [shape = 'u8[512]{0}', space=smem, size = 0x200, scoped, tag = 'input window, operand 0, single buffered']
    #allocation3 [shape = 's32[1]{0}', space=sflag, size = 0x4, scoped, tag = 'scoped memory for tpu_custom_call.1']
    #allocation4 [shape = 'u8[512]{0}', space=smem, size = 0x200, scoped, tag = 'input window, operand 1, single buffered']
    #allocation5 [shape = 's32[1]{0}', space=sflag, size = 0x4, scoped, tag = 'scoped memory for tpu_custom_call.1']
    %14 = vsyncpa [#allocation3], 0
    %15 = vsyncpa [#allocation5], 0
    // Predicated region
    $region2: #{tpu_custom_call.1} parent=1 // pred_check
      _
    $region3: #{tpu_custom_call.1} parent=1 // pred_check_branch
      %17 = sbr.rel (0) target = $region5
    $region4: #{tpu_custom_call.1} parent=1 // pred_region
      %s19 = ssub.s32 16, 16
      %20 = vsyncadd [#allocation3], %s19
      %s22 = sshll.u32 %s0, 4
      %s23 = int_to_ptr.vmem [resolvable:$true] %s22
      %25 = dma.vmem_to_smem %s23, 16, [#allocation2], [#allocation3]
    $region5: #{tpu_custom_call.1} parent=1 // pred_fallthru
      _
    // Predicated region
    $region6: #{tpu_custom_call.1} parent=1 // pred_check
      _
    $region7: #{tpu_custom_call.1} parent=1 // pred_check_branch
      %27 = sbr.rel (0) target = $region9
    $region8: #{tpu_custom_call.1} parent=1 // pred_region
      %s29 = ssub.s32 16, 16
      %30 = vsyncadd [#allocation5], %s29
      %s32 = sshll.u32 %s1, 4
      %s33 = int_to_ptr.vmem [resolvable:$true] %s32
      %35 = dma.vmem_to_smem %s33, 16, [#allocation4], [#allocation5]
    $region9: #{tpu_custom_call.1} parent=1 // pred_fallthru
      _
    // Predicated region
    $region10: #{tpu_custom_call.1} parent=1 // pred_check
      _
    $region11: #{tpu_custom_call.1} parent=1 // pred_check_branch
      %37 = sbr.rel (0) target = $region13
    $region12: #{tpu_custom_call.1} parent=1 // pred_region
      _
    $region13: #{tpu_custom_call.1} parent=1 // pred_fallthru
      _
    // Predicated region
    $region14: #{tpu_custom_call.1} parent=1 // pred_check
      _
    $region15: #{tpu_custom_call.1} parent=1 // pred_check_branch
      %39 = sbr.rel (0) target = $region17
    $region16: #{tpu_custom_call.1} parent=1 // pred_region
      _
    $region17: #{tpu_custom_call.1} parent=1 // pred_fallthru
      _
    // Predicated region
    $region18: #{tpu_custom_call.1} parent=1 // pred_check
      _
    $region19: #{tpu_custom_call.1} parent=1 // pred_check_branch
      %41 = sbr.rel (0) target = $region21
    $region20: #{tpu_custom_call.1} parent=1 // pred_region
      _
    $region21: #{tpu_custom_call.1} parent=1 // pred_fallthru
      _
    // Predicated region
    $region22: #{tpu_custom_call.1} parent=1 // pred_check
      _
    $region23: #{tpu_custom_call.1} parent=1 // pred_check_branch
      %43 = sbr.rel (0) target = $region25
    $region24: #{tpu_custom_call.1} parent=1 // pred_region
      _
    $region25: #{tpu_custom_call.1} parent=1 // pred_fallthru
      _
    // Predicated region
    $region26: #{tpu_custom_call.1} parent=1 // pred_check
      _
    $region27: #{tpu_custom_call.1} parent=1 // pred_check_branch
      %45 = sbr.rel (0) target = $region29
    $region28: #{tpu_custom_call.1} parent=1 // pred_region
      _
    $region29: #{tpu_custom_call.1} parent=1 // pred_fallthru
      _
    // Predicated region
    $region30: #{tpu_custom_call.1} parent=1 // pred_check
      _
    $region31: #{tpu_custom_call.1} parent=1 // pred_check_branch
      %47 = sbr.rel (0) target = $region33
    $region32: #{tpu_custom_call.1} parent=1 // pred_region
      _
    $region33: #{tpu_custom_call.1} parent=1 // pred_fallthru
      _
    // Predicated region
    $region34: #{tpu_custom_call.1} parent=1 // pred_check
      _
    $region35: #{tpu_custom_call.1} parent=1 // pred_check_branch
      %49 = sbr.rel (0) target = $region37
    $region36: #{tpu_custom_call.1} parent=1 // pred_region
      _
    $region37: #{tpu_custom_call.1} parent=1 // pred_fallthru
      _
    // Predicated region
    $region38: #{tpu_custom_call.1} parent=1 // pred_check
      _
    $region39: #{tpu_custom_call.1} parent=1 // pred_check_branch
      %51 = sbr.rel (0) target = $region41
    $region40: #{tpu_custom_call.1} parent=1 // pred_region
      %52 = dma.done [#allocation3], 16
    $region41: #{tpu_custom_call.1} parent=1 // pred_fallthru
      _
    // Predicated region
    $region42: #{tpu_custom_call.1} parent=1 // pred_check
      _
    $region43: #{tpu_custom_call.1} parent=1 // pred_check_branch
      %54 = sbr.rel (0) target = $region45
    $region44: #{tpu_custom_call.1} parent=1 // pred_region
      %55 = dma.done [#allocation5], 16
    $region45: #{tpu_custom_call.1} parent=1 // pred_fallthru
      _
    %56 = sfence
    %v57 = vld [vmem:[%s5] sm:$0xff]
    %v58 = vld [vmem:[%s5 + $0x8] sm:$0xff]
    %v59 = vld [vmem:[%s5 + $0x10] sm:$0xff]
    %v60 = vld [vmem:[%s5 + $0x18] sm:$0xff]
    %v61 = vld [vmem:[%s6] sm:$0xff]
    %v62 = vld [vmem:[%s6 + $0x8] sm:$0xff]
    %v63 = vld [vmem:[%s6 + $0x10] sm:$0xff]
    %v64 = vld [vmem:[%s6 + $0x18] sm:$0xff]
    %v65 = vld [vmem:[%s7] sm:$0xff]
    %v66 = vld [vmem:[%s7 + $0x8] sm:$0xff]
    %v67 = vld [vmem:[%s7 + $0x10] sm:$0xff]
    %v68 = vld [vmem:[%s7 + $0x18] sm:$0xff]
    %v69 = vld [vmem:[%s8] sm:$0xff]
    %v70 = vld [vmem:[%s8 + $0x8] sm:$0xff]
    %v71 = vld [vmem:[%s8 + $0x10] sm:$0xff]
    %v72 = vld [vmem:[%s8 + $0x18] sm:$0xff]
    %s73 = sld [smem:[#allocation4]]
    %s74 = sld [smem:[#allocation4 + $0x1]]
    %s75 = sld [smem:[#allocation4 + $0x2]]
    %s76 = smul.u32 0, 2
    %v77 = vld [vmem:[%s3] sm:$0x7]
    %v78 = vld [vmem:[%s4] sm:$0x7]
    %80 = vset.pattern.permute.xlu0 0
    %81 = vperm.xlu0 %80, %v57
    %v82 = vpop.permute.xlu0 %81
    %85 = vset.pattern.permute.xlu0 0
    %86 = vperm.xlu0 %85, %v58
    %v87 = vpop.permute.xlu0 %86
    %90 = vset.pattern.permute.xlu0 0
    %91 = vperm.xlu0 %90, %v59
    %v92 = vpop.permute.xlu0 %91
    %95 = vset.pattern.permute.xlu0 0
    %96 = vperm.xlu0 %95, %v60
    %v97 = vpop.permute.xlu0 %96
    %v99 = vlaneseq
    %v100 = vshrl.u32 %v99, 7
    %v101 = vsub.s32 0, %v100
    %v102 = vrot.slane %v77, %v101
    %v103 = vmul.f32 %v82, %v102
    %v104 = vmul.f32 %v87, %v102
    %v105 = vmul.f32 %v92, %v102
    %v106 = vmul.f32 %v97, %v102
    %107 = vset.pattern.permute.xlu0 1
    %108 = vperm.xlu0 %107, %v57
    %v109 = vpop.permute.xlu0 %108
    %111 = vset.pattern.permute.xlu0 1
    %112 = vperm.xlu0 %111, %v58
    %v113 = vpop.permute.xlu0 %112
    %115 = vset.pattern.permute.xlu0 1
    %116 = vperm.xlu0 %115, %v59
    %v117 = vpop.permute.xlu0 %116
    %119 = vset.pattern.permute.xlu0 1
    %120 = vperm.xlu0 %119, %v60
    %v121 = vpop.permute.xlu0 %120
    %v123 = vlaneseq
    %v124 = vshrl.u32 %v123, 7
    %v125 = vsub.s32 1, %v124
    %v126 = vrot.slane %v77, %v125
    %v127 = vmul.f32 %v109, %v126
    %v128 = vmul.f32 %v113, %v126
    %v129 = vmul.f32 %v117, %v126
    %v130 = vmul.f32 %v121, %v126
    %v131 = vadd.f32 %v103, %v127
    %v132 = vadd.f32 %v104, %v128
    %v133 = vadd.f32 %v105, %v129
    %v134 = vadd.f32 %v106, %v130
    %135 = vset.pattern.permute.xlu0 2
    %136 = vperm.xlu0 %135, %v57
    %v137 = vpop.permute.xlu0 %136
    %139 = vset.pattern.permute.xlu0 2
    %140 = vperm.xlu0 %139, %v58
    %v141 = vpop.permute.xlu0 %140
    %143 = vset.pattern.permute.xlu0 2
    %144 = vperm.xlu0 %143, %v59
    %v145 = vpop.permute.xlu0 %144
    %147 = vset.pattern.permute.xlu0 2
    %148 = vperm.xlu0 %147, %v60
    %v149 = vpop.permute.xlu0 %148
    %v151 = vlaneseq
    %v152 = vshrl.u32 %v151, 7
    %v153 = vsub.s32 2, %v152
    %v154 = vrot.slane %v77, %v153
    %v155 = vmul.f32 %v137, %v154
    %v156 = vmul.f32 %v141, %v154
    %v157 = vmul.f32 %v145, %v154
    %v158 = vmul.f32 %v149, %v154
    %v159 = vadd.f32 %v131, %v155
    %v160 = vadd.f32 %v132, %v156
    %v161 = vadd.f32 %v133, %v157
    %v162 = vadd.f32 %v134, %v158
    %v163 = vld [vmem:[%s2] sm:$0xff]
    %v164 = vld [vmem:[%s2 + $0x8] sm:$0xff]
    %v165 = vld [vmem:[%s2 + $0x10] sm:$0xff]
    %v166 = vld [vmem:[%s2 + $0x18] sm:$0xff]
    %168 = vset.pattern.permute.xlu0 0
    %169 = vperm.xlu0 %168, %v163
    %v170 = vpop.permute.xlu0 %169
    %173 = vset.pattern.permute.xlu0 0
    %174 = vperm.xlu0 %173, %v164
    %v175 = vpop.permute.xlu0 %174
    %178 = vset.pattern.permute.xlu0 0
    %179 = vperm.xlu0 %178, %v165
    %v180 = vpop.permute.xlu0 %179
    %183 = vset.pattern.permute.xlu0 0
    %184 = vperm.xlu0 %183, %v166
    %v185 = vpop.permute.xlu0 %184
    %v187 = vadd.f32 %v159, %v170
    %v188 = vadd.f32 %v160, %v175
    %v189 = vadd.f32 %v161, %v180
    %v190 = vadd.f32 %v162, %v185
    %v191 = vmax.f32 %v187, 0.0
    %v192 = vmax.f32 %v188, 0.0
    %v193 = vmax.f32 %v189, 0.0
    %v194 = vmax.f32 %v190, 0.0
    %196 = vset.pattern.permute.xlu0 0
    %197 = vperm.xlu0 %196, %v65
    %v198 = vpop.permute.xlu0 %197
    %201 = vset.pattern.permute.xlu0 0
    %202 = vperm.xlu0 %201, %v66
    %v203 = vpop.permute.xlu0 %202
    %206 = vset.pattern.permute.xlu0 0
    %207 = vperm.xlu0 %206, %v67
    %v208 = vpop.permute.xlu0 %207
    %211 = vset.pattern.permute.xlu0 0
    %212 = vperm.xlu0 %211, %v68
    %v213 = vpop.permute.xlu0 %212
    %vm215 = vcmask 261120
    %v217 = vsel %vm215, %v61, 0
    %v220 = vsel %vm215, %v62, 0
    %v223 = vsel %vm215, %v63, 0
    %v226 = vsel %vm215, %v64, 0
    %228 = vmatprep.subr.mxu0 0.0
    %229 = vmatpush1.msra.mxu0 %v191
    %230 = vmatprep.subr.mxu0 0.0
    %231 = vmatpush1.msra.mxu0 %v192
    %232 = vmatprep.subr.mxu0 0.0
    %233 = vmatpush1.msra.mxu0 %v193
    %234 = vmatprep.subr.mxu0 0.0
    %235 = vmatpush1.msra.mxu0 %v194
    %236 = vmatprep.subr.mxu0 0.0
    %237 = vmatpush1.msra.mxu0 0.0
    %238 = vmatprep.subr.mxu0 0.0
    %239 = vmatpush1.msra.mxu0 0.0
    %240 = vmatprep.subr.mxu0 0.0
    %241 = vmatpush1.msra.mxu0 0.0
    %242 = vmatprep.subr.mxu0 0.0
    %243 = vmatpush1.msra.mxu0 0.0
    %244 = vmatprep.subr.mxu0 0.0
    %245 = vmatpush1.msra.mxu0 0.0
    %246 = vmatprep.subr.mxu0 0.0
    %247 = vmatpush1.msra.mxu0 0.0
    %248 = vmatprep.subr.mxu0 0.0
    %249 = vmatpush1.msra.mxu0 0.0
    %250 = vmatprep.subr.mxu0 0.0
    %251 = vmatpush1.msra.mxu0 0.0
    %252 = vmatprep.subr.mxu0 0.0
    %253 = vmatpush1.msra.mxu0 0.0
    %254 = vmatprep.subr.mxu0 0.0
    %255 = vmatpush1.msra.mxu0 0.0
    %256 = vmatprep.subr.mxu0 0.0
    %257 = vmatpush1.msra.mxu0 0.0
    %258 = vmatprep.subr.mxu0 0.0
    %259 = vmatpush1.msra.mxu0 0.0
    %260 = vmatprep.subr.mxu0 0.0
    %261 = vmatpush1.msra.mxu0 0.0
    %262 = vmatprep.subr.mxu0 0.0
    %263 = vmatpush1.msra.mxu0 0.0
    %264 = vmatprep.subr.mxu0 0.0
    %265 = vmatpush1.msra.mxu0 0.0
    %266 = vmatprep.subr.mxu0 0.0
    %267 = vmatpush1.msra.mxu0 0.0
    %268 = vmatprep.subr.mxu0 0.0
    %269 = vmatpush1.msra.mxu0 0.0
    %270 = vmatprep.subr.mxu0 0.0
    %271 = vmatpush1.msra.mxu0 0.0
    %272 = vmatprep.subr.mxu0 0.0
    %273 = vmatpush1.msra.mxu0 0.0
    %274 = vmatprep.subr.mxu0 0.0
    %275 = vmatpush1.msra.mxu0 0.0
    %276 = vmatprep.subr.mxu0 0.0
    %277 = vmatpush1.msra.mxu0 0.0
    %278 = vmatprep.subr.mxu0 0.0
    %279 = vmatpush1.msra.mxu0 0.0
    %280 = vmatprep.subr.mxu0 0.0
    %281 = vmatpush1.msra.mxu0 0.0
    %282 = vmatprep.subr.mxu0 0.0
    %283 = vmatpush1.msra.mxu0 0.0
    %284 = vmatprep.subr.mxu0 0.0
    %285 = vmatpush1.msra.mxu0 0.0
    %286 = vmatprep.subr.mxu0 0.0
    %287 = vmatpush1.msra.mxu0 0.0
    %288 = vmatprep.subr.mxu0 0.0
    %289 = vmatpush1.msra.mxu0 0.0
    %290 = vmatprep.subr.mxu0 0.0
    %291 = vmatpush1.msra.mxu0 0.0
    %292 = vmatprep.mubr.f32.mxu0 0.0
    %293 = vmatmul.mubr.f32.gmra.mrb[0].mxu0 %v217
    %v294 = vpop.f32.mrb[0].mxu0
    %v295 = vadd.f32 %v198, %v294
    %v296 = vpop.f32.mrb[0].mxu0
    %297 = vmatprep.mubr.f32.mxu0 0.0
    %298 = vmatmul.mubr.f32.gmra.mrb[0].mxu0 %v220
    %v299 = vpop.f32.mrb[0].mxu0
    %v300 = vadd.f32 %v203, %v299
    %v301 = vpop.f32.mrb[0].mxu0
    %302 = vmatprep.mubr.f32.mxu0 0.0
    %303 = vmatmul.mubr.f32.gmra.mrb[0].mxu0 %v223
    %v304 = vpop.f32.mrb[0].mxu0
    %v305 = vadd.f32 %v208, %v304
    %v306 = vpop.f32.mrb[0].mxu0
    %307 = vmatprep.mubr.f32.mxu0 0.0
    %308 = vmatmul.mubr.f32.gmra.mrb[0].mxu0 %v226
    %v309 = vpop.f32.mrb[0].mxu0
    %v310 = vadd.f32 %v213, %v309
    %v311 = vpop.f32.mrb[0].mxu0
    %312 = vdwg.mxu0
    %v313 = vmax.f32 %v295, 0.0
    %v314 = vmax.f32 %v300, 0.0
    %v315 = vmax.f32 %v305, 0.0
    %v316 = vmax.f32 %v310, 0.0
    %318 = vset.pattern.permute.xlu0 0
    %319 = vperm.xlu0 %318, %v69
    %v320 = vpop.permute.xlu0 %319
    %323 = vset.pattern.permute.xlu0 0
    %324 = vperm.xlu0 %323, %v70
    %v325 = vpop.permute.xlu0 %324
    %328 = vset.pattern.permute.xlu0 0
    %329 = vperm.xlu0 %328, %v71
    %v330 = vpop.permute.xlu0 %329
    %333 = vset.pattern.permute.xlu0 0
    %334 = vperm.xlu0 %333, %v72
    %v335 = vpop.permute.xlu0 %334
    %v337 = vmul.f32 %v320, %v313
    %v338 = vmul.f32 %v325, %v314
    %v339 = vmul.f32 %v330, %v315
    %v340 = vmul.f32 %v335, %v316
    %v341 = vadd.f32 %v337, %v338
    %v342 = vadd.f32 %v341, %v339
    %v343 = vadd.f32 %v342, %v340
    %v344 = vrot.slane %v343, 4
    %v345 = vadd.f32 %v343, %v344
    %v346 = vrot.slane %v345, 2
    %v347 = vadd.f32 %v345, %v346
    %v348 = vrot.slane %v347, 1
    %v349 = vadd.f32 %v347, %v348
    %v350 = vstv %s73
    %v351 = vadd.f32 %v349, %v350
    %352 = vset.pattern.permute.xlu0 1
    %353 = vperm.xlu0 %352, %v69
    %v354 = vpop.permute.xlu0 %353
    %356 = vset.pattern.permute.xlu0 1
    %357 = vperm.xlu0 %356, %v70
    %v358 = vpop.permute.xlu0 %357
    %360 = vset.pattern.permute.xlu0 1
    %361 = vperm.xlu0 %360, %v71
    %v362 = vpop.permute.xlu0 %361
    %364 = vset.pattern.permute.xlu0 1
    %365 = vperm.xlu0 %364, %v72
    %v366 = vpop.permute.xlu0 %365
    %v368 = vmul.f32 %v354, %v313
    %v369 = vmul.f32 %v358, %v314
    %v370 = vmul.f32 %v362, %v315
    %v371 = vmul.f32 %v366, %v316
    %v372 = vadd.f32 %v368, %v369
    %v373 = vadd.f32 %v372, %v370
    %v374 = vadd.f32 %v373, %v371
    %v375 = vrot.slane %v374, 4
    %v376 = vadd.f32 %v374, %v375
    %v377 = vrot.slane %v376, 2
    %v378 = vadd.f32 %v376, %v377
    %v379 = vrot.slane %v378, 1
    %v380 = vadd.f32 %v378, %v379
    %v381 = vstv %s74
    %v382 = vadd.f32 %v380, %v381
    %383 = vset.pattern.permute.xlu0 2
    %384 = vperm.xlu0 %383, %v69
    %v385 = vpop.permute.xlu0 %384
    %387 = vset.pattern.permute.xlu0 2
    %388 = vperm.xlu0 %387, %v70
    %v389 = vpop.permute.xlu0 %388
    %391 = vset.pattern.permute.xlu0 2
    %392 = vperm.xlu0 %391, %v71
    %v393 = vpop.permute.xlu0 %392
    %395 = vset.pattern.permute.xlu0 2
    %396 = vperm.xlu0 %395, %v72
    %v397 = vpop.permute.xlu0 %396
    %v399 = vmul.f32 %v385, %v313
    %v400 = vmul.f32 %v389, %v314
    %v401 = vmul.f32 %v393, %v315
    %v402 = vmul.f32 %v397, %v316
    %v403 = vadd.f32 %v399, %v400
    %v404 = vadd.f32 %v403, %v401
    %v405 = vadd.f32 %v404, %v402
    %v406 = vrot.slane %v405, 4
    %v407 = vadd.f32 %v405, %v406
    %v408 = vrot.slane %v407, 2
    %v409 = vadd.f32 %v407, %v408
    %v410 = vrot.slane %v409, 1
    %v411 = vadd.f32 %v409, %v410
    %v412 = vstv %s75
    %v413 = vadd.f32 %v411, %v412
    %414 = vadd.xlane.f32.xlu0 %v351
    %v415 = vpop.xlane.xlu0 %414
    %v416 = vmul.f32 %v415, 0.0078125
    %v417 = vsub.f32 %v351, %v416
    %418 = vadd.xlane.f32.xlu0 %v382
    %v419 = vpop.xlane.xlu0 %418
    %v420 = vmul.f32 %v419, 0.0078125
    %v421 = vsub.f32 %v382, %v420
    %422 = vadd.xlane.f32.xlu0 %v413
    %v423 = vpop.xlane.xlu0 %422
    %v424 = vmul.f32 %v423, 0.0078125
    %v425 = vsub.f32 %v413, %v424
    %s426 = smul.u32 0, 6
    %s427 = sld [smem:[#allocation2 + %s426]]
    %s428 = sadd.s32 %s426, 1
    %s429 = sld [smem:[#allocation2 + %s428]]
    %s430 = sadd.s32 %s426, 2
    %s431 = sld [smem:[#allocation2 + %s430]]
    %v432 = vstv %s427
    %v433 = vadd.f32 %v417, %v432
    %v434 = vstv %s429
    %v435 = vadd.f32 %v421, %v434
    %v436 = vstv %s431
    %v437 = vadd.f32 %v425, %v436
    %v438 = vand.u32 2147483647, %v78
    %vm439 = vcmp.le.f32.partialorder %v438, 0.7853982
    %vm440 = vcmp.lt.s32.totalorder %v78, 0
    %v441 = vand.u32 %v78, 2139095040
    %v442 = vshrl.u32 %v441, 23
    %v443 = vsub.s32 %v442, 127
    %v444 = vand.u32 2147483647, %v78
    %v445 = vand.u32 %v444, 8388607
    %v446 = vor.u32 %v445, 8388608
    %v447 = vsub.s32 0, %v446
    %v448 = vadd.s32 %v443, 1
    %vm449 = vcmp.gt.s32.totalorder %v448, 0
    %v450 = vsel %vm449, %v448, 0
    %v451 = vshrl.u32 %v450, 5
    %v452 = vand.u32 %v450, 31
    %v453 = vsub.s32 32, %v452
    %v454 = vshrl.u32 683565275, %v453
    %v455 = vshll.u32 683565275, %v452
    %v456 = vshrl.u32 2475754826, %v453
    %v457 = vor.u32 %v455, %v456
    %v458 = vshll.u32 2475754826, %v452
    %v459 = vshrl.u32 2131351028, %v453
    %v460 = vor.u32 %v458, %v459
    %v461 = vshll.u32 2131351028, %v452
    %v462 = vshrl.u32 2102212464, %v453
    %v463 = vor.u32 %v461, %v462
    %v464 = vshll.u32 2102212464, %v452
    %v465 = vshrl.u32 920167782, %v453
    %v466 = vor.u32 %v464, %v465
    %v467 = vshll.u32 920167782, %v452
    %v468 = vshrl.u32 1326507024, %v453
    %v469 = vor.u32 %v467, %v468
    %vm470 = vcmp.lt.s32.totalorder %v451, 1
    %vm471 = vcmp.lt.s32.totalorder %v451, 2
    %vm472 = vcmp.lt.s32.totalorder %v451, 3
    %vm473 = vcmp.lt.s32.totalorder %v451, 4
    %v474 = vsel %vm470, %v454, %v457
    %v475 = vsel %vm473, %v463, 2102212464
    %v476 = vsel %vm472, %v460, %v475
    %v477 = vsel %vm471, %v474, %v476
    %v478 = vsel %vm470, %v457, %v460
    %v479 = vsel %vm473, %v466, 920167782
    %v480 = vsel %vm472, %v463, %v479
    %v481 = vsel %vm471, %v478, %v480
    %v482 = vsel %vm470, %v460, %v463
    %v483 = vsel %vm473, %v469, 1326507024
    %v484 = vsel %vm472, %v466, %v483
    %v485 = vsel %vm471, %v482, %v484
    %v486 = vshll.u32 %v446, 8
    %v487 = vmul.u32.u64.compose %v486, %v485
    %v488 = vextract.low.u32 %v487
    %v489 = vextract.high.u32 %v487
    %v490 = vmul.u32.u64.compose %v486, %v481
    %v491 = vextract.low.u32 %v490
    %v492 = vextract.high.u32 %v490
    %v493 = vmul.u32 %v486, %v477
    %v494 = vadd.s32 %v489, %v491
    %vm495 = vc.u32 %v489, %v491
    %v496 = vadd.s32 %v492, 1
    %v497 = vsel %vm495, %v496, %v492
    %v498 = vadd.s32 %v493, %v497
    %v499 = vadd.s32 %v498, 536870912
    %v500 = vshrl.u32 %v499, 30
    %v501 = vshll.u32 %v500, 30
    %v502 = vsub.s32 %v498, %v501
    %vm503 = vcmp.lt.s32.totalorder %v502, 0
    %v504 = vsub.s32 0, %v502
    %v505 = vsel %vm503, %v504, %v502
    %v506 = vclz %v505
    %v507 = vsub.s32 %v506, 2
    %vm508 = vcmp.gt.s32.totalorder 0, %v507
    %v509 = vsel %vm508, 0, %v507
    %v510 = vsub.s32 32, %v509
    %v511 = vshll.u32 %v502, %v509
    %v512 = vshrl.u32 %v494, %v510
    %v513 = vor.u32 %v511, %v512
    %v514 = vsub.s32 4294967266, %v509
    %v515 = vadd.s32 %v514, 127
    %v516 = vshll.u32 %v515, 23
    %v517 = vor.u32 4788187, %v516
    %v518 = vand.u32 2147483647, %v517
    %v520 = vcvt.s32.f32 %v513
    %v521 = vmul.f32 %v520, %v518
    %v522 = vxor.u32 %v521, 2147483648
    %v523 = vsel %vm440, %v522, %v521
    %v524 = vsub.s32 4, %v500
    %v525 = vsel %vm440, %v524, %v500
    %v526 = vsel %vm439, %v78, %v523
    %v527 = vsel %vm439, 0, %v525
    %v528 = vcosq.f32.pop %v526
    %v529 = vsinq.f32.pop %v526
    %vm530 = vweird.f32 %v78
    %v531 = vadd.s32 %v527, 3
    %v532 = vand.u32 %v531, 3
    %vm533 = vcmp.lt.s32.totalorder %v532, 2
    %vm534 = vcmp.eq.s32.totalorder %v532, 0
    %v535 = vxor.u32 %v529, 2147483648
    %v536 = vsel %vm534, %v528, %v535
    %vm537 = vcmp.eq.s32.totalorder %v532, 2
    %v538 = vxor.u32 %v528, 2147483648
    %v539 = vsel %vm537, %v538, %v529
    %v540 = vsel %vm533, %v536, %v539
    %v541 = vsel %vm530, nan, %v540
    %v542 = vand.u32 2147483647, %v78
    %vm543 = vcmp.le.f32.partialorder %v542, 0.7853982
    %vm544 = vcmp.lt.s32.totalorder %v78, 0
    %v545 = vand.u32 %v78, 2139095040
    %v546 = vshrl.u32 %v545, 23
    %v547 = vsub.s32 %v546, 127
    %v548 = vand.u32 2147483647, %v78
    %v549 = vand.u32 %v548, 8388607
    %v550 = vor.u32 %v549, 8388608
    %v551 = vsub.s32 0, %v550
    %v552 = vadd.s32 %v547, 1
    %vm553 = vcmp.gt.s32.totalorder %v552, 0
    %v554 = vsel %vm553, %v552, 0
    %v555 = vshrl.u32 %v554, 5
    %v556 = vand.u32 %v554, 31
    %v557 = vsub.s32 32, %v556
    %v558 = vshrl.u32 683565275, %v557
    %v559 = vshll.u32 683565275, %v556
    %v560 = vshrl.u32 2475754826, %v557
    %v561 = vor.u32 %v559, %v560
    %v562 = vshll.u32 2475754826, %v556
    %v563 = vshrl.u32 2131351028, %v557
    %v564 = vor.u32 %v562, %v563
    %v565 = vshll.u32 2131351028, %v556
    %v566 = vshrl.u32 2102212464, %v557
    %v567 = vor.u32 %v565, %v566
    %v568 = vshll.u32 2102212464, %v556
    %v569 = vshrl.u32 920167782, %v557
    %v570 = vor.u32 %v568, %v569
    %v571 = vshll.u32 920167782, %v556
    %v572 = vshrl.u32 1326507024, %v557
    %v573 = vor.u32 %v571, %v572
    %vm574 = vcmp.lt.s32.totalorder %v555, 1
    %vm575 = vcmp.lt.s32.totalorder %v555, 2
    %vm576 = vcmp.lt.s32.totalorder %v555, 3
    %vm577 = vcmp.lt.s32.totalorder %v555, 4
    %v578 = vsel %vm574, %v558, %v561
    %v579 = vsel %vm577, %v567, 2102212464
    %v580 = vsel %vm576, %v564, %v579
    %v581 = vsel %vm575, %v578, %v580
    %v582 = vsel %vm574, %v561, %v564
    %v583 = vsel %vm577, %v570, 920167782
    %v584 = vsel %vm576, %v567, %v583
    %v585 = vsel %vm575, %v582, %v584
    %v586 = vsel %vm574, %v564, %v567
    %v587 = vsel %vm577, %v573, 1326507024
    %v588 = vsel %vm576, %v570, %v587
    %v589 = vsel %vm575, %v586, %v588
    %v590 = vshll.u32 %v550, 8
    %v591 = vmul.u32.u64.compose %v590, %v589
    %v592 = vextract.low.u32 %v591
    %v593 = vextract.high.u32 %v591
    %v594 = vmul.u32.u64.compose %v590, %v585
    %v595 = vextract.low.u32 %v594
    %v596 = vextract.high.u32 %v594
    %v597 = vmul.u32 %v590, %v581
    %v598 = vadd.s32 %v593, %v595
    %vm599 = vc.u32 %v593, %v595
    %v600 = vadd.s32 %v596, 1
    %v601 = vsel %vm599, %v600, %v596
    %v602 = vadd.s32 %v597, %v601
    %v603 = vadd.s32 %v602, 536870912
    %v604 = vshrl.u32 %v603, 30
    %v605 = vshll.u32 %v604, 30
    %v606 = vsub.s32 %v602, %v605
    %vm607 = vcmp.lt.s32.totalorder %v606, 0
    %v608 = vsub.s32 0, %v606
    %v609 = vsel %vm607, %v608, %v606
    %v610 = vclz %v609
    %v611 = vsub.s32 %v610, 2
    %vm612 = vcmp.gt.s32.totalorder 0, %v611
    %v613 = vsel %vm612, 0, %v611
    %v614 = vsub.s32 32, %v613
    %v615 = vshll.u32 %v606, %v613
    %v616 = vshrl.u32 %v598, %v614
    %v617 = vor.u32 %v615, %v616
    %v618 = vsub.s32 4294967266, %v613
    %v619 = vadd.s32 %v618, 127
    %v620 = vshll.u32 %v619, 23
    %v621 = vor.u32 4788187, %v620
    %v622 = vand.u32 2147483647, %v621
    %v624 = vcvt.s32.f32 %v617
    %v625 = vmul.f32 %v624, %v622
    %v626 = vxor.u32 %v625, 2147483648
    %v627 = vsel %vm544, %v626, %v625
    %v628 = vsub.s32 4, %v604
    %v629 = vsel %vm544, %v628, %v604
    %v630 = vsel %vm543, %v78, %v627
    %v631 = vsel %vm543, 0, %v629
    %v632 = vcosq.f32.pop %v630
    %v633 = vsinq.f32.pop %v630
    %vm634 = vweird.f32 %v78
    %v635 = vand.u32 %v631, 3
    %vm636 = vcmp.lt.s32.totalorder %v635, 2
    %vm637 = vcmp.eq.s32.totalorder %v635, 0
    %v638 = vxor.u32 %v633, 2147483648
    %v639 = vsel %vm637, %v632, %v638
    %vm640 = vcmp.eq.s32.totalorder %v635, 2
    %v641 = vxor.u32 %v632, 2147483648
    %v642 = vsel %vm640, %v641, %v633
    %v643 = vsel %vm636, %v639, %v642
    %v644 = vsel %vm634, nan, %v643
    %v645 = vmul.f32 %v433, %v644
    %v647 = vrot.slane %v645, 2
    %v649 = vadd.f32 %v78, %v647
    %v650 = vmul.f32 %v435, %v541
    %v652 = vrot.slane %v650, 2
    %v654 = vsub.f32 %v649, %v652
    %655 = vst [vmem:[%s9] sm:$0x1] %v654
    %v656 = vmul.f32 %v433, %v541
    %v658 = vrot.slane %v656, 1
    %v660 = vadd.f32 %v78, %v658
    %v661 = vmul.f32 %v435, %v644
    %v663 = vrot.slane %v661, 1
    %v665 = vadd.f32 %v660, %v663
    %666 = vst [vmem:[%s9] sm:$0x2] %v665
    %v667 = vadd.f32 %v78, %v437
    %v668 = vadd.f32 %v667, 3.1415927
    %v669 = vand.u32 2147483647, %v668
    %v670 = vrcp.pop 6.2831855
    %v671 = vmul.f32 %v669, %v670
    %v672 = vfloor.f32 %v671
    %v673 = vmul.f32 %v672, 6.2831855
    %v674 = vsub.f32 %v669, %v673
    %vm675 = vcmp.eq.f32.partialorder %v674, 6.2831855
    %v676 = vsel %vm675, 0.0, %v674
    %v677 = vand.u32 2147483647, %v676
    %v678 = vand.u32 %v668, 2147483648
    %v679 = vor.u32 %v677, %v678
    %vm680 = vcmp.ne.f32.partialorder %v679, 0.0
    %vm681 = vcmp.lt.f32.partialorder %v679, 0.0
    %vm682 = vmand %vm681, %vm680
    %v683 = vadd.f32 %v679, 6.2831855
    %v684 = vsel %vm682, %v683, %v679
    %v685 = vsub.f32 %v684, 3.1415927
    %686 = vst [vmem:[%s9] sm:$0x4] %v685
    %s687 = sadd.s32 %s76, 1
    %s688 = scalar_lea.vmem %s3, 4
    %v689 = vld [vmem:[%s688] sm:$0x7]
    %s690 = scalar_lea.vmem %s4, 4
    %v691 = vld [vmem:[%s690] sm:$0x7]
    %v692 = vlaneseq
    %v693 = vshrl.u32 %v692, 7
    %v694 = vsub.s32 0, %v693
    %v695 = vrot.slane %v689, %v694
    %v696 = vmul.f32 %v82, %v695
    %v697 = vmul.f32 %v87, %v695
    %v698 = vmul.f32 %v92, %v695
    %v699 = vmul.f32 %v97, %v695
    %v700 = vlaneseq
    %v701 = vshrl.u32 %v700, 7
    %v702 = vsub.s32 1, %v701
    %v703 = vrot.slane %v689, %v702
    %v704 = vmul.f32 %v109, %v703
    %v705 = vmul.f32 %v113, %v703
    %v706 = vmul.f32 %v117, %v703
    %v707 = vmul.f32 %v121, %v703
    %v708 = vadd.f32 %v696, %v704
    %v709 = vadd.f32 %v697, %v705
    %v710 = vadd.f32 %v698, %v706
    %v711 = vadd.f32 %v699, %v707
    %v712 = vlaneseq
    %v713 = vshrl.u32 %v712, 7
    %v714 = vsub.s32 2, %v713
    %v715 = vrot.slane %v689, %v714
    %v716 = vmul.f32 %v137, %v715
    %v717 = vmul.f32 %v141, %v715
    %v718 = vmul.f32 %v145, %v715
    %v719 = vmul.f32 %v149, %v715
    %v720 = vadd.f32 %v708, %v716
    %v721 = vadd.f32 %v709, %v717
    %v722 = vadd.f32 %v710, %v718
    %v723 = vadd.f32 %v711, %v719
    %s724 = scalar_lea.vmem %s2, 32
    %v725 = vld [vmem:[%s724] sm:$0xff]
    %v726 = vld [vmem:[%s724 + $0x8] sm:$0xff]
    %v727 = vld [vmem:[%s724 + $0x10] sm:$0xff]
    %v728 = vld [vmem:[%s724 + $0x18] sm:$0xff]
    %730 = vset.pattern.permute.xlu0 0
    %731 = vperm.xlu0 %730, %v725
    %v732 = vpop.permute.xlu0 %731
    %735 = vset.pattern.permute.xlu0 0
    %736 = vperm.xlu0 %735, %v726
    %v737 = vpop.permute.xlu0 %736
    %740 = vset.pattern.permute.xlu0 0
    %741 = vperm.xlu0 %740, %v727
    %v742 = vpop.permute.xlu0 %741
    %745 = vset.pattern.permute.xlu0 0
    %746 = vperm.xlu0 %745, %v728
    %v747 = vpop.permute.xlu0 %746
    %v749 = vadd.f32 %v720, %v732
    %v750 = vadd.f32 %v721, %v737
    %v751 = vadd.f32 %v722, %v742
    %v752 = vadd.f32 %v723, %v747
    %v753 = vmax.f32 %v749, 0.0
    %v754 = vmax.f32 %v750, 0.0
    %v755 = vmax.f32 %v751, 0.0
    %v756 = vmax.f32 %v752, 0.0
    %757 = vmatprep.subr.mxu0 0.0
    %758 = vmatpush1.msra.mxu0 %v753
    %759 = vmatprep.subr.mxu0 0.0
    %760 = vmatpush1.msra.mxu0 %v754
    %761 = vmatprep.subr.mxu0 0.0
    %762 = vmatpush1.msra.mxu0 %v755
    %763 = vmatprep.subr.mxu0 0.0
    %764 = vmatpush1.msra.mxu0 %v756
    %765 = vmatprep.subr.mxu0 0.0
    %766 = vmatpush1.msra.mxu0 0.0
    %767 = vmatprep.subr.mxu0 0.0
    %768 = vmatpush1.msra.mxu0 0.0
    %769 = vmatprep.subr.mxu0 0.0
    %770 = vmatpush1.msra.mxu0 0.0
    %771 = vmatprep.subr.mxu0 0.0
    %772 = vmatpush1.msra.mxu0 0.0
    %773 = vmatprep.subr.mxu0 0.0
    %774 = vmatpush1.msra.mxu0 0.0
    %775 = vmatprep.subr.mxu0 0.0
    %776 = vmatpush1.msra.mxu0 0.0
    %777 = vmatprep.subr.mxu0 0.0
    %778 = vmatpush1.msra.mxu0 0.0
    %779 = vmatprep.subr.mxu0 0.0
    %780 = vmatpush1.msra.mxu0 0.0
    %781 = vmatprep.subr.mxu0 0.0
    %782 = vmatpush1.msra.mxu0 0.0
    %783 = vmatprep.subr.mxu0 0.0
    %784 = vmatpush1.msra.mxu0 0.0
    %785 = vmatprep.subr.mxu0 0.0
    %786 = vmatpush1.msra.mxu0 0.0
    %787 = vmatprep.subr.mxu0 0.0
    %788 = vmatpush1.msra.mxu0 0.0
    %789 = vmatprep.subr.mxu0 0.0
    %790 = vmatpush1.msra.mxu0 0.0
    %791 = vmatprep.subr.mxu0 0.0
    %792 = vmatpush1.msra.mxu0 0.0
    %793 = vmatprep.subr.mxu0 0.0
    %794 = vmatpush1.msra.mxu0 0.0
    %795 = vmatprep.subr.mxu0 0.0
    %796 = vmatpush1.msra.mxu0 0.0
    %797 = vmatprep.subr.mxu0 0.0
    %798 = vmatpush1.msra.mxu0 0.0
    %799 = vmatprep.subr.mxu0 0.0
    %800 = vmatpush1.msra.mxu0 0.0
    %801 = vmatprep.subr.mxu0 0.0
    %802 = vmatpush1.msra.mxu0 0.0
    %803 = vmatprep.subr.mxu0 0.0
    %804 = vmatpush1.msra.mxu0 0.0
    %805 = vmatprep.subr.mxu0 0.0
    %806 = vmatpush1.msra.mxu0 0.0
    %807 = vmatprep.subr.mxu0 0.0
    %808 = vmatpush1.msra.mxu0 0.0
    %809 = vmatprep.subr.mxu0 0.0
    %810 = vmatpush1.msra.mxu0 0.0
    %811 = vmatprep.subr.mxu0 0.0
    %812 = vmatpush1.msra.mxu0 0.0
    %813 = vmatprep.subr.mxu0 0.0
    %814 = vmatpush1.msra.mxu0 0.0
    %815 = vmatprep.subr.mxu0 0.0
    %816 = vmatpush1.msra.mxu0 0.0
    %817 = vmatprep.subr.mxu0 0.0
    %818 = vmatpush1.msra.mxu0 0.0
    %819 = vmatprep.subr.mxu0 0.0
    %820 = vmatpush1.msra.mxu0 0.0
    %821 = vmatprep.mubr.f32.mxu0 0.0
    %822 = vmatmul.mubr.f32.gmra.mrb[0].mxu0 %v217
    %v823 = vpop.f32.mrb[0].mxu0
    %v824 = vadd.f32 %v198, %v823
    %v825 = vpop.f32.mrb[0].mxu0
    %826 = vmatprep.mubr.f32.mxu0 0.0
    %827 = vmatmul.mubr.f32.gmra.mrb[0].mxu0 %v220
    %v828 = vpop.f32.mrb[0].mxu0
    %v829 = vadd.f32 %v203, %v828
    %v830 = vpop.f32.mrb[0].mxu0
    %831 = vmatprep.mubr.f32.mxu0 0.0
    %832 = vmatmul.mubr.f32.gmra.mrb[0].mxu0 %v223
    %v833 = vpop.f32.mrb[0].mxu0
    %v834 = vadd.f32 %v208, %v833
    %v835 = vpop.f32.mrb[0].mxu0
    %836 = vmatprep.mubr.f32.mxu0 0.0
    %837 = vmatmul.mubr.f32.gmra.mrb[0].mxu0 %v226
    %v838 = vpop.f32.mrb[0].mxu0
    %v839 = vadd.f32 %v213, %v838
    %v840 = vpop.f32.mrb[0].mxu0
    %841 = vdwg.mxu0
    %v842 = vmax.f32 %v824, 0.0
    %v843 = vmax.f32 %v829, 0.0
    %v844 = vmax.f32 %v834, 0.0
    %v845 = vmax.f32 %v839, 0.0
    %v846 = vmul.f32 %v320, %v842
    %v847 = vmul.f32 %v325, %v843
    %v848 = vmul.f32 %v330, %v844
    %v849 = vmul.f32 %v335, %v845
    %v850 = vadd.f32 %v846, %v847
    %v851 = vadd.f32 %v850, %v848
    %v852 = vadd.f32 %v851, %v849
    %v853 = vrot.slane %v852, 4
    %v854 = vadd.f32 %v852, %v853
    %v855 = vrot.slane %v854, 2
    %v856 = vadd.f32 %v854, %v855
    %v857 = vrot.slane %v856, 1
    %v858 = vadd.f32 %v856, %v857
    %v859 = vadd.f32 %v858, %v350
    %v860 = vmul.f32 %v354, %v842
    %v861 = vmul.f32 %v358, %v843
    %v862 = vmul.f32 %v362, %v844
    %v863 = vmul.f32 %v366, %v845
    %v864 = vadd.f32 %v860, %v861
    %v865 = vadd.f32 %v864, %v862
    %v866 = vadd.f32 %v865, %v863
    %v867 = vrot.slane %v866, 4
    %v868 = vadd.f32 %v866, %v867
    %v869 = vrot.slane %v868, 2
    %v870 = vadd.f32 %v868, %v869
    %v871 = vrot.slane %v870, 1
    %v872 = vadd.f32 %v870, %v871
    %v873 = vadd.f32 %v872, %v381
    %v874 = vmul.f32 %v385, %v842
    %v875 = vmul.f32 %v389, %v843
    %v876 = vmul.f32 %v393, %v844
    %v877 = vmul.f32 %v397, %v845
    %v878 = vadd.f32 %v874, %v875
    %v879 = vadd.f32 %v878, %v876
    %v880 = vadd.f32 %v879, %v877
    %v881 = vrot.slane %v880, 4
    %v882 = vadd.f32 %v880, %v881
    %v883 = vrot.slane %v882, 2
    %v884 = vadd.f32 %v882, %v883
    %v885 = vrot.slane %v884, 1
    %v886 = vadd.f32 %v884, %v885
    %v887 = vadd.f32 %v886, %v412
    %888 = vadd.xlane.f32.xlu0 %v859
    %v889 = vpop.xlane.xlu0 %888
    %v890 = vmul.f32 %v889, 0.0078125
    %v891 = vsub.f32 %v859, %v890
    %892 = vadd.xlane.f32.xlu0 %v873
    %v893 = vpop.xlane.xlu0 %892
    %v894 = vmul.f32 %v893, 0.0078125
    %v895 = vsub.f32 %v873, %v894
    %896 = vadd.xlane.f32.xlu0 %v887
    %v897 = vpop.xlane.xlu0 %896
    %v898 = vmul.f32 %v897, 0.0078125
    %v899 = vsub.f32 %v887, %v898
    %s900 = smul.u32 %s687, 3
    %s901 = sld [smem:[#allocation2 + %s900]]
    %s902 = sadd.s32 %s900, 1
    %s903 = sld [smem:[#allocation2 + %s902]]
    %s904 = sadd.s32 %s900, 2
    %s905 = sld [smem:[#allocation2 + %s904]]
    %v906 = vstv %s901
    %v907 = vadd.f32 %v891, %v906
    %v908 = vstv %s903
    %v909 = vadd.f32 %v895, %v908
    %v910 = vstv %s905
    %v911 = vadd.f32 %v899, %v910
    %v912 = vand.u32 2147483647, %v691
    %vm913 = vcmp.le.f32.partialorder %v912, 0.7853982
    %vm914 = vcmp.lt.s32.totalorder %v691, 0
    %v915 = vand.u32 %v691, 2139095040
    %v916 = vshrl.u32 %v915, 23
    %v917 = vsub.s32 %v916, 127
    %v918 = vand.u32 2147483647, %v691
    %v919 = vand.u32 %v918, 8388607
    %v920 = vor.u32 %v919, 8388608
    %v921 = vsub.s32 0, %v920
    %v922 = vadd.s32 %v917, 1
    %vm923 = vcmp.gt.s32.totalorder %v922, 0
    %v924 = vsel %vm923, %v922, 0
    %v925 = vshrl.u32 %v924, 5
    %v926 = vand.u32 %v924, 31
    %v927 = vsub.s32 32, %v926
    %v928 = vshrl.u32 683565275, %v927
    %v929 = vshll.u32 683565275, %v926
    %v930 = vshrl.u32 2475754826, %v927
    %v931 = vor.u32 %v929, %v930
    %v932 = vshll.u32 2475754826, %v926
    %v933 = vshrl.u32 2131351028, %v927
    %v934 = vor.u32 %v932, %v933
    %v935 = vshll.u32 2131351028, %v926
    %v936 = vshrl.u32 2102212464, %v927
    %v937 = vor.u32 %v935, %v936
    %v938 = vshll.u32 2102212464, %v926
    %v939 = vshrl.u32 920167782, %v927
    %v940 = vor.u32 %v938, %v939
    %v941 = vshll.u32 920167782, %v926
    %v942 = vshrl.u32 1326507024, %v927
    %v943 = vor.u32 %v941, %v942
    %vm944 = vcmp.lt.s32.totalorder %v925, 1
    %vm945 = vcmp.lt.s32.totalorder %v925, 2
    %vm946 = vcmp.lt.s32.totalorder %v925, 3
    %vm947 = vcmp.lt.s32.totalorder %v925, 4
    %v948 = vsel %vm944, %v928, %v931
    %v949 = vsel %vm947, %v937, 2102212464
    %v950 = vsel %vm946, %v934, %v949
    %v951 = vsel %vm945, %v948, %v950
    %v952 = vsel %vm944, %v931, %v934
    %v953 = vsel %vm947, %v940, 920167782
    %v954 = vsel %vm946, %v937, %v953
    %v955 = vsel %vm945, %v952, %v954
    %v956 = vsel %vm944, %v934, %v937
    %v957 = vsel %vm947, %v943, 1326507024
    %v958 = vsel %vm946, %v940, %v957
    %v959 = vsel %vm945, %v956, %v958
    %v960 = vshll.u32 %v920, 8
    %v961 = vmul.u32.u64.compose %v960, %v959
    %v962 = vextract.low.u32 %v961
    %v963 = vextract.high.u32 %v961
    %v964 = vmul.u32.u64.compose %v960, %v955
    %v965 = vextract.low.u32 %v964
    %v966 = vextract.high.u32 %v964
    %v967 = vmul.u32 %v960, %v951
    %v968 = vadd.s32 %v963, %v965
    %vm969 = vc.u32 %v963, %v965
    %v970 = vadd.s32 %v966, 1
    %v971 = vsel %vm969, %v970, %v966
    %v972 = vadd.s32 %v967, %v971
    %v973 = vadd.s32 %v972, 536870912
    %v974 = vshrl.u32 %v973, 30
    %v975 = vshll.u32 %v974, 30
    %v976 = vsub.s32 %v972, %v975
    %vm977 = vcmp.lt.s32.totalorder %v976, 0
    %v978 = vsub.s32 0, %v976
    %v979 = vsel %vm977, %v978, %v976
    %v980 = vclz %v979
    %v981 = vsub.s32 %v980, 2
    %vm982 = vcmp.gt.s32.totalorder 0, %v981
    %v983 = vsel %vm982, 0, %v981
    %v984 = vsub.s32 32, %v983
    %v985 = vshll.u32 %v976, %v983
    %v986 = vshrl.u32 %v968, %v984
    %v987 = vor.u32 %v985, %v986
    %v988 = vsub.s32 4294967266, %v983
    %v989 = vadd.s32 %v988, 127
    %v990 = vshll.u32 %v989, 23
    %v991 = vor.u32 4788187, %v990
    %v992 = vand.u32 2147483647, %v991
    %v994 = vcvt.s32.f32 %v987
    %v995 = vmul.f32 %v994, %v992
    %v996 = vxor.u32 %v995, 2147483648
    %v997 = vsel %vm914, %v996, %v995
    %v998 = vsub.s32 4, %v974
    %v999 = vsel %vm914, %v998, %v974
    %v1000 = vsel %vm913, %v691, %v997
    %v1001 = vsel %vm913, 0, %v999
    %v1002 = vcosq.f32.pop %v1000
    %v1003 = vsinq.f32.pop %v1000
    %vm1004 = vweird.f32 %v691
    %v1005 = vadd.s32 %v1001, 3
    %v1006 = vand.u32 %v1005, 3
    %vm1007 = vcmp.lt.s32.totalorder %v1006, 2
    %vm1008 = vcmp.eq.s32.totalorder %v1006, 0
    %v1009 = vxor.u32 %v1003, 2147483648
    %v1010 = vsel %vm1008, %v1002, %v1009
    %vm1011 = vcmp.eq.s32.totalorder %v1006, 2
    %v1012 = vxor.u32 %v1002, 2147483648
    %v1013 = vsel %vm1011, %v1012, %v1003
    %v1014 = vsel %vm1007, %v1010, %v1013
    %v1015 = vsel %vm1004, nan, %v1014
    %v1016 = vand.u32 2147483647, %v691
    %vm1017 = vcmp.le.f32.partialorder %v1016, 0.7853982
    %vm1018 = vcmp.lt.s32.totalorder %v691, 0
    %v1019 = vand.u32 %v691, 2139095040
    %v1020 = vshrl.u32 %v1019, 23
    %v1021 = vsub.s32 %v1020, 127
    %v1022 = vand.u32 2147483647, %v691
    %v1023 = vand.u32 %v1022, 8388607
    %v1024 = vor.u32 %v1023, 8388608
    %v1025 = vsub.s32 0, %v1024
    %v1026 = vadd.s32 %v1021, 1
    %vm1027 = vcmp.gt.s32.totalorder %v1026, 0
    %v1028 = vsel %vm1027, %v1026, 0
    %v1029 = vshrl.u32 %v1028, 5
    %v1030 = vand.u32 %v1028, 31
    %v1031 = vsub.s32 32, %v1030
    %v1032 = vshrl.u32 683565275, %v1031
    %v1033 = vshll.u32 683565275, %v1030
    %v1034 = vshrl.u32 2475754826, %v1031
    %v1035 = vor.u32 %v1033, %v1034
    %v1036 = vshll.u32 2475754826, %v1030
    %v1037 = vshrl.u32 2131351028, %v1031
    %v1038 = vor.u32 %v1036, %v1037
    %v1039 = vshll.u32 2131351028, %v1030
    %v1040 = vshrl.u32 2102212464, %v1031
    %v1041 = vor.u32 %v1039, %v1040
    %v1042 = vshll.u32 2102212464, %v1030
    %v1043 = vshrl.u32 920167782, %v1031
    %v1044 = vor.u32 %v1042, %v1043
    %v1045 = vshll.u32 920167782, %v1030
    %v1046 = vshrl.u32 1326507024, %v1031
    %v1047 = vor.u32 %v1045, %v1046
    %vm1048 = vcmp.lt.s32.totalorder %v1029, 1
    %vm1049 = vcmp.lt.s32.totalorder %v1029, 2
    %vm1050 = vcmp.lt.s32.totalorder %v1029, 3
    %vm1051 = vcmp.lt.s32.totalorder %v1029, 4
    %v1052 = vsel %vm1048, %v1032, %v1035
    %v1053 = vsel %vm1051, %v1041, 2102212464
    %v1054 = vsel %vm1050, %v1038, %v1053
    %v1055 = vsel %vm1049, %v1052, %v1054
    %v1056 = vsel %vm1048, %v1035, %v1038
    %v1057 = vsel %vm1051, %v1044, 920167782
    %v1058 = vsel %vm1050, %v1041, %v1057
    %v1059 = vsel %vm1049, %v1056, %v1058
    %v1060 = vsel %vm1048, %v1038, %v1041
    %v1061 = vsel %vm1051, %v1047, 1326507024
    %v1062 = vsel %vm1050, %v1044, %v1061
    %v1063 = vsel %vm1049, %v1060, %v1062
    %v1064 = vshll.u32 %v1024, 8
    %v1065 = vmul.u32.u64.compose %v1064, %v1063
    %v1066 = vextract.low.u32 %v1065
    %v1067 = vextract.high.u32 %v1065
    %v1068 = vmul.u32.u64.compose %v1064, %v1059
    %v1069 = vextract.low.u32 %v1068
    %v1070 = vextract.high.u32 %v1068
    %v1071 = vmul.u32 %v1064, %v1055
    %v1072 = vadd.s32 %v1067, %v1069
    %vm1073 = vc.u32 %v1067, %v1069
    %v1074 = vadd.s32 %v1070, 1
    %v1075 = vsel %vm1073, %v1074, %v1070
    %v1076 = vadd.s32 %v1071, %v1075
    %v1077 = vadd.s32 %v1076, 536870912
    %v1078 = vshrl.u32 %v1077, 30
    %v1079 = vshll.u32 %v1078, 30
    %v1080 = vsub.s32 %v1076, %v1079
    %vm1081 = vcmp.lt.s32.totalorder %v1080, 0
    %v1082 = vsub.s32 0, %v1080
    %v1083 = vsel %vm1081, %v1082, %v1080
    %v1084 = vclz %v1083
    %v1085 = vsub.s32 %v1084, 2
    %vm1086 = vcmp.gt.s32.totalorder 0, %v1085
    %v1087 = vsel %vm1086, 0, %v1085
    %v1088 = vsub.s32 32, %v1087
    %v1089 = vshll.u32 %v1080, %v1087
    %v1090 = vshrl.u32 %v1072, %v1088
    %v1091 = vor.u32 %v1089, %v1090
    %v1092 = vsub.s32 4294967266, %v1087
    %v1093 = vadd.s32 %v1092, 127
    %v1094 = vshll.u32 %v1093, 23
    %v1095 = vor.u32 4788187, %v1094
    %v1096 = vand.u32 2147483647, %v1095
    %v1098 = vcvt.s32.f32 %v1091
    %v1099 = vmul.f32 %v1098, %v1096
    %v1100 = vxor.u32 %v1099, 2147483648
    %v1101 = vsel %vm1018, %v1100, %v1099
    %v1102 = vsub.s32 4, %v1078
    %v1103 = vsel %vm1018, %v1102, %v1078
    %v1104 = vsel %vm1017, %v691, %v1101
    %v1105 = vsel %vm1017, 0, %v1103
    %v1106 = vcosq.f32.pop %v1104
    %v1107 = vsinq.f32.pop %v1104
    %vm1108 = vweird.f32 %v691
    %v1109 = vand.u32 %v1105, 3
    %vm1110 = vcmp.lt.s32.totalorder %v1109, 2
    %vm1111 = vcmp.eq.s32.totalorder %v1109, 0
    %v1112 = vxor.u32 %v1107, 2147483648
    %v1113 = vsel %vm1111, %v1106, %v1112
    %vm1114 = vcmp.eq.s32.totalorder %v1109, 2
    %v1115 = vxor.u32 %v1106, 2147483648
    %v1116 = vsel %vm1114, %v1115, %v1107
    %v1117 = vsel %vm1110, %v1113, %v1116
    %v1118 = vsel %vm1108, nan, %v1117
    %v1119 = vmul.f32 %v907, %v1118
    %v1121 = vrot.slane %v1119, 2
    %v1123 = vadd.f32 %v691, %v1121
    %v1124 = vmul.f32 %v909, %v1015
    %v1126 = vrot.slane %v1124, 2
    %v1128 = vsub.f32 %v1123, %v1126
    %s1129 = scalar_lea.vmem %s9, 4
    %1130 = vst [vmem:[%s1129] sm:$0x1] %v1128
    %v1131 = vmul.f32 %v907, %v1015
    %v1133 = vrot.slane %v1131, 1
    %v1135 = vadd.f32 %v691, %v1133
    %v1136 = vmul.f32 %v909, %v1118
    %v1138 = vrot.slane %v1136, 1
    %v1140 = vadd.f32 %v1135, %v1138
    %1141 = vst [vmem:[%s1129] sm:$0x2] %v1140
    %v1142 = vadd.f32 %v691, %v911
    %v1143 = vadd.f32 %v1142, 3.1415927
    %v1144 = vand.u32 2147483647, %v1143
    %v1145 = vrcp.pop 6.2831855
    %v1146 = vmul.f32 %v1144, %v1145
    %v1147 = vfloor.f32 %v1146
    %v1148 = vmul.f32 %v1147, 6.2831855
    %v1149 = vsub.f32 %v1144, %v1148
    %vm1150 = vcmp.eq.f32.partialorder %v1149, 6.2831855
    %v1151 = vsel %vm1150, 0.0, %v1149
    %v1152 = vand.u32 2147483647, %v1151
    %v1153 = vand.u32 %v1143, 2147483648
    %v1154 = vor.u32 %v1152, %v1153
    %vm1155 = vcmp.ne.f32.partialorder %v1154, 0.0
    %vm1156 = vcmp.lt.f32.partialorder %v1154, 0.0
    %vm1157 = vmand %vm1156, %vm1155
    %v1158 = vadd.f32 %v1154, 6.2831855
    %v1159 = vsel %vm1157, %v1158, %v1154
    %v1160 = vsub.f32 %v1159, 3.1415927
    %1161 = vst [vmem:[%s1129] sm:$0x4] %v1160
    // Predicated region
    $region46: #{tpu_custom_call.1} parent=1 // pred_check
      _
    $region47: #{tpu_custom_call.1} parent=1 // pred_check_branch
      %1163 = sbr.rel (0) target = $region49
    $region48: #{tpu_custom_call.1} parent=1 // pred_region
      _
    $region49: #{tpu_custom_call.1} parent=1 // pred_fallthru
      _
    // Predicated region
    $region50: #{tpu_custom_call.1} parent=1 // pred_check
      _
    $region51: #{tpu_custom_call.1} parent=1 // pred_check_branch
      %1165 = sbr.rel (0) target = $region53
    $region52: #{tpu_custom_call.1} parent=1 // pred_region
      _
    $region53: #{tpu_custom_call.1} parent=1 // pred_fallthru
      _
    %1166 = vsyncpa [#allocation3], 1
    %1167 = vsyncpa [#allocation5], 1

</llo_original>
